<compile_context>
chip_gen: v7x
topology: tpu7x:2x2x1
jax: 0.10.0
libtpu: 0.0.40
codegen_flags: <defaults>
</compile_context>

<pallas_src>
import jax
import jax.numpy as jnp
from jax import lax
from jax.experimental import pallas as pl
from jax.experimental.pallas import tpu as pltpu


def _siam_lstm_kernel(gates_in_ref, whh_ref, hout_ref):
    """Fused left+right LSTM recurrence.

    gates_in_ref: (T, B_TILE, 8*Hp) f32  -- precomputed x@W_ih + bias, gate-interleaved
                                            layout [i_l,i_r,f_l,f_r,g_l,g_r,o_l,o_r].
    whh_ref:      (2*Hp, 8*Hp)      bf16 -- block-diagonal recurrent weights (left|right).
    hout_ref:     (B_TILE, 2*Hp)    f32  -- final hidden states [h_left | h_right].
    """
    T, B, G = gates_in_ref.shape
    Hp2 = whh_ref.shape[0]              # 2 * Hp (one gate slice width, multiple of 128)

    whh = whh_ref[...]                  # load recurrent weights once (bf16)

    def step(t, carry):
        h, c = carry                    # f32 (B, 2*Hp)
        # one MXU matmul serves both towers; input projection already folded in.
        g = gates_in_ref[t] + jnp.dot(h.astype(jnp.bfloat16), whh,
                                      preferred_element_type=jnp.float32)
        i_g = jax.nn.sigmoid(g[:, 0 * Hp2:1 * Hp2])
        f_g = jax.nn.sigmoid(g[:, 1 * Hp2:2 * Hp2])
        g_g = jnp.tanh(g[:, 2 * Hp2:3 * Hp2])
        o_g = jax.nn.sigmoid(g[:, 3 * Hp2:4 * Hp2])
        c_new = f_g * c + i_g * g_g
        h_new = o_g * jnp.tanh(c_new)   # tanh(c_new) computed once
        return (h_new, c_new)

    h0 = jnp.zeros((B, Hp2), jnp.float32)
    c0 = jnp.zeros((B, Hp2), jnp.float32)
    h_fin, _ = lax.fori_loop(0, T, step, (h0, c0), unroll=True)

    hout_ref[...] = h_fin               # lane-dense (B, 2*Hp) store


def siam_lstm_forward(sentence_a, sentence_b, params):
    """sentence_a/sentence_b: int32 (B, T) token ids. Returns f32 (B,) scores."""
    emb = params["embedding"]                      # (V, E) f32, frozen
    B, T = sentence_a.shape
    E = emb.shape[1]
    H = params["w_hh_l"].shape[0]

    B_TILE = 8
    Bp = ((B + B_TILE - 1) // B_TILE) * B_TILE     # sublane-aligned batch
    Hp = ((H + 63) // 64) * 64                     # 2*Hp is a multiple of 128 (lane-aligned)

    sa = jnp.pad(sentence_a, ((0, Bp - B), (0, 0)))
    sb = jnp.pad(sentence_b, ((0, Bp - B), (0, 0)))

    def input_gates(tokens, w_ih, bias):
        # Whole-sequence input projection as one bf16 GEMM (outside the serial chain),
        # bias (b_ih + b_hh) folded in here so the hot loop never re-broadcasts it.
        x = jnp.take(emb, tokens, axis=0).astype(jnp.bfloat16)        # (Bp, T, E)
        g = jnp.einsum("bte,eg->btg", x, w_ih.astype(jnp.bfloat16),
                       preferred_element_type=jnp.float32)            # (Bp, T, 4H)
        g = g + bias.reshape(1, 1, 4 * H).astype(jnp.float32)
        g = g.reshape(Bp, T, 4, H)
        g = jnp.pad(g, ((0, 0), (0, 0), (0, 0), (0, Hp - H)))         # zero-pad hidden units
        return g                                                      # (Bp, T, 4, Hp)

    gl = input_gates(sa, params["w_ih_l"], params["b_l"])
    gr = input_gates(sb, params["w_ih_r"], params["b_r"])
    # interleave towers inside each gate: (Bp, T, 4, 2, Hp) -> (Bp, T, 8*Hp), then time-major
    g_cat = jnp.stack([gl, gr], axis=3).reshape(Bp, T, 8 * Hp)
    g_cat = jnp.transpose(g_cat, (1, 0, 2))                           # (T, Bp, 8*Hp)

    def pad_hh(w):                                                    # (H, 4H) -> (Hp, 4, Hp)
        w = w.reshape(H, 4, H)
        return jnp.pad(w, ((0, Hp - H), (0, 0), (0, Hp - H)))

    # block-diagonal recurrent weight: rows [h_left | h_right], cols gate-interleaved
    w_blk = jnp.zeros((2, Hp, 4, 2, Hp), jnp.float32)
    w_blk = w_blk.at[0, :, :, 0, :].set(pad_hh(params["w_hh_l"]))
    w_blk = w_blk.at[1, :, :, 1, :].set(pad_hh(params["w_hh_r"]))
    w_blk = w_blk.reshape(2 * Hp, 8 * Hp).astype(jnp.bfloat16)

    h_fin = pl.pallas_call(
        _siam_lstm_kernel,
        out_shape=jax.ShapeDtypeStruct((Bp, 2 * Hp), jnp.float32),
        grid=(Bp // B_TILE,),
        in_specs=[
            pl.BlockSpec((T, B_TILE, 8 * Hp), lambda b: (0, b, 0)),
            pl.BlockSpec((2 * Hp, 8 * Hp), lambda b: (0, 0)),
        ],
        out_specs=pl.BlockSpec((B_TILE, 2 * Hp), lambda b: (b, 0)),
        compiler_params=pltpu.CompilerParams(
            dimension_semantics=("parallel",)),
    )(g_cat, w_blk)

    # epilogue in plain JAX (keeps kernel output lane-dense); only the REAL H units are used,
    # so zero-padded hidden units cannot leak into the distance.
    h_l = h_fin[:B, :H]
    h_r = h_fin[:B, Hp:Hp + H]
    diff = h_l - h_r + jnp.float32(1e-6)   # PairwiseDistance(p=1) adds eps to the difference
    return jnp.exp(-jnp.sum(jnp.abs(diff), axis=-1))   # (B,), == torch.squeeze(pred_score)


def init_params(key, vocab, embedding_dim, hidden_size):
    """Deterministic synthetic parameters matching PyTorch LSTM shapes.

    PyTorch stores weight_ih as (4H, E) and weight_hh as (4H, H); we keep the transposed
    layout (E, 4H) / (H, 4H) so the projections are plain x @ W. Gate order is i,f,g,o.
    Bias is the sum b_ih + b_hh stored as a single (1, 4H) row.
    """
    ks = jax.random.split(key, 7)
    H, E = hidden_size, embedding_dim
    bound = 1.0 / jnp.sqrt(jnp.float32(H))

    def u(k, shape):
        return jax.random.uniform(k, shape, jnp.float32, -bound, bound)

    return {
        "embedding": jax.random.normal(ks[0], (vocab, E), jnp.float32),
        "w_ih_l": u(ks[1], (E, 4 * H)),
        "w_hh_l": u(ks[2], (H, 4 * H)),
        "b_l":    u(ks[3], (1, 4 * H)) * 2.0,   # b_ih + b_hh
        "w_ih_r": u(ks[4], (E, 4 * H)),
        "w_hh_r": u(ks[5], (H, 4 * H)),
        "b_r":    u(ks[6], (1, 4 * H)) * 2.0,
    }


if __name__ == "__main__":
    key = jax.random.PRNGKey(0)
    B, T, E, H, V = 2, 8, 32, 32, 50   # batch, max_seq_len, embedding_dim, hidden_size, vocab

    k_par, k_a, k_b = jax.random.split(key, 3)
    params = init_params(k_par, V, E, H)
    sentence_a = jax.random.randint(k_a, (B, T), 0, V, dtype=jnp.int32)
    sentence_b = jax.random.randint(k_b, (B, T), 0, V, dtype=jnp.int32)

    pred = jax.jit(siam_lstm_forward)(sentence_a, sentence_b, params)
    jax.block_until_ready(pred)

    assert pred.shape == (B,)
    assert bool(jnp.all(jnp.isfinite(pred)))
    assert bool(jnp.all(pred > 0.0)) and bool(jnp.all(pred <= 1.0 + 1e-5))
    print("KERNEL_OK")
</pallas_src>

<mosaic_0001>
module attributes {stable_mosaic.version = 11 : i64} {
  func.func @_siam_lstm_kernel(%arg0: i32, %arg1: memref<8x8x512xf32, #tpu.memory_space<vmem>>, %arg2: memref<128x512xbf16, #tpu.memory_space<vmem>>, %arg3: memref<8x128xf32, #tpu.memory_space<vmem>>) attributes {dimension_semantics = [#tpu.dimension_semantics<parallel>], iteration_bounds = array<i64: 1>, scalar_prefetch = 0 : i64, scratch_operands = 0 : i64, tpu.core_type = #tpu.core_type<tc>, window_params = [{transform_indices = @transform_0, window_bounds = array<i64: 8, 8, 512>}, {pipeline_mode = #tpu.pipeline_mode<synchronous>, transform_indices = @transform_1, window_bounds = array<i64: 128, 512>}, {transform_indices = @transform_2, window_bounds = array<i64: 8, 128>}]} {
    %c0 = arith.constant 0 : index
    %c0_0 = arith.constant 0 : index
    %0 = vector.load %arg2[%c0, %c0_0] : memref<128x512xbf16, #tpu.memory_space<vmem>>, vector<128x512xbf16>
    %cst = arith.constant 0.000000e+00 : f32
    %1 = vector.broadcast %cst : f32 to vector<8x128xf32>
    %cst_1 = arith.constant 0.000000e+00 : f32
    %2 = vector.broadcast %cst_1 : f32 to vector<8x128xf32>
    %c0_i32 = arith.constant 0 : i32
    %3 = arith.index_cast %c0_i32 : i32 to index
    %c0_2 = arith.constant 0 : index
    %c0_3 = arith.constant 0 : index
    %4 = vector.load %arg1[%3, %c0_2, %c0_3] : memref<8x8x512xf32, #tpu.memory_space<vmem>>, vector<1x8x512xf32>
    %5 = vector.shape_cast %4 : vector<1x8x512xf32> to vector<8x512xf32>
    %6 = arith.truncf %1 : vector<8x128xf32> to vector<8x128xbf16>
    %cst_4 = arith.constant dense<0.000000e+00> : vector<8x512xf32>
    %7 = tpu.matmul %6, %0, %cst_4 {dimension_numbers = #tpu.dot_dimension_numbers<[1], [0], [0], [1], [0, 0, 1, 1], [], []>} : vector<8x128xbf16>, vector<128x512xbf16>, vector<8x512xf32> -> vector<8x512xf32>
    %8 = arith.addf %5, %7 : vector<8x512xf32>
    %9 = vector.extract_strided_slice %8 {offsets = [0, 0], sizes = [8, 128], strides = [1, 1]} : vector<8x512xf32> to vector<8x128xf32>
    %10 = arith.negf %9 : vector<8x128xf32>
    %11 = math.exp %10 : vector<8x128xf32>
    %cst_5 = arith.constant 1.000000e+00 : f32
    %12 = vector.broadcast %cst_5 : f32 to vector<8x128xf32>
    %13 = arith.addf %12, %11 : vector<8x128xf32>
    %14 = arith.divf %12, %13 : vector<8x128xf32>
    %15 = vector.extract_strided_slice %8 {offsets = [0, 128], sizes = [8, 128], strides = [1, 1]} : vector<8x512xf32> to vector<8x128xf32>
    %16 = arith.negf %15 : vector<8x128xf32>
    %17 = math.exp %16 : vector<8x128xf32>
    %cst_6 = arith.constant 1.000000e+00 : f32
    %18 = vector.broadcast %cst_6 : f32 to vector<8x128xf32>
    %19 = arith.addf %18, %17 : vector<8x128xf32>
    %20 = arith.divf %18, %19 : vector<8x128xf32>
    %21 = vector.extract_strided_slice %8 {offsets = [0, 256], sizes = [8, 128], strides = [1, 1]} : vector<8x512xf32> to vector<8x128xf32>
    %22 = math.tanh %21 : vector<8x128xf32>
    %23 = vector.extract_strided_slice %8 {offsets = [0, 384], sizes = [8, 128], strides = [1, 1]} : vector<8x512xf32> to vector<8x128xf32>
    %24 = arith.negf %23 : vector<8x128xf32>
    %25 = math.exp %24 : vector<8x128xf32>
    %cst_7 = arith.constant 1.000000e+00 : f32
    %26 = vector.broadcast %cst_7 : f32 to vector<8x128xf32>
    %27 = arith.addf %26, %25 : vector<8x128xf32>
    %28 = arith.divf %26, %27 : vector<8x128xf32>
    %29 = arith.mulf %20, %2 : vector<8x128xf32>
    %30 = arith.mulf %14, %22 : vector<8x128xf32>
    %31 = arith.addf %29, %30 : vector<8x128xf32>
    %32 = math.tanh %31 : vector<8x128xf32>
    %33 = arith.mulf %28, %32 : vector<8x128xf32>
    %c1_i32 = arith.constant 1 : i32
    %34 = arith.index_cast %c1_i32 : i32 to index
    %c0_8 = arith.constant 0 : index
    %c0_9 = arith.constant 0 : index
    %35 = vector.load %arg1[%34, %c0_8, %c0_9] : memref<8x8x512xf32, #tpu.memory_space<vmem>>, vector<1x8x512xf32>
    %36 = vector.shape_cast %35 : vector<1x8x512xf32> to vector<8x512xf32>
    %37 = arith.truncf %33 : vector<8x128xf32> to vector<8x128xbf16>
    %cst_10 = arith.constant dense<0.000000e+00> : vector<8x512xf32>
    %38 = tpu.matmul %37, %0, %cst_10 {dimension_numbers = #tpu.dot_dimension_numbers<[1], [0], [0], [1], [0, 0, 1, 1], [], []>} : vector<8x128xbf16>, vector<128x512xbf16>, vector<8x512xf32> -> vector<8x512xf32>
    %39 = arith.addf %36, %38 : vector<8x512xf32>
    %40 = vector.extract_strided_slice %39 {offsets = [0, 0], sizes = [8, 128], strides = [1, 1]} : vector<8x512xf32> to vector<8x128xf32>
    %41 = arith.negf %40 : vector<8x128xf32>
    %42 = math.exp %41 : vector<8x128xf32>
    %cst_11 = arith.constant 1.000000e+00 : f32
    %43 = vector.broadcast %cst_11 : f32 to vector<8x128xf32>
    %44 = arith.addf %43, %42 : vector<8x128xf32>
    %45 = arith.divf %43, %44 : vector<8x128xf32>
    %46 = vector.extract_strided_slice %39 {offsets = [0, 128], sizes = [8, 128], strides = [1, 1]} : vector<8x512xf32> to vector<8x128xf32>
    %47 = arith.negf %46 : vector<8x128xf32>
    %48 = math.exp %47 : vector<8x128xf32>
    %cst_12 = arith.constant 1.000000e+00 : f32
    %49 = vector.broadcast %cst_12 : f32 to vector<8x128xf32>
    %50 = arith.addf %49, %48 : vector<8x128xf32>
    %51 = arith.divf %49, %50 : vector<8x128xf32>
    %52 = vector.extract_strided_slice %39 {offsets = [0, 256], sizes = [8, 128], strides = [1, 1]} : vector<8x512xf32> to vector<8x128xf32>
    %53 = math.tanh %52 : vector<8x128xf32>
    %54 = vector.extract_strided_slice %39 {offsets = [0, 384], sizes = [8, 128], strides = [1, 1]} : vector<8x512xf32> to vector<8x128xf32>
    %55 = arith.negf %54 : vector<8x128xf32>
    %56 = math.exp %55 : vector<8x128xf32>
    %cst_13 = arith.constant 1.000000e+00 : f32
    %57 = vector.broadcast %cst_13 : f32 to vector<8x128xf32>
    %58 = arith.addf %57, %56 : vector<8x128xf32>
    %59 = arith.divf %57, %58 : vector<8x128xf32>
    %60 = arith.mulf %51, %31 : vector<8x128xf32>
    %61 = arith.mulf %45, %53 : vector<8x128xf32>
    %62 = arith.addf %60, %61 : vector<8x128xf32>
    %63 = math.tanh %62 : vector<8x128xf32>
    %64 = arith.mulf %59, %63 : vector<8x128xf32>
    %c2_i32 = arith.constant 2 : i32
    %65 = arith.index_cast %c2_i32 : i32 to index
    %c0_14 = arith.constant 0 : index
    %c0_15 = arith.constant 0 : index
    %66 = vector.load %arg1[%65, %c0_14, %c0_15] : memref<8x8x512xf32, #tpu.memory_space<vmem>>, vector<1x8x512xf32>
    %67 = vector.shape_cast %66 : vector<1x8x512xf32> to vector<8x512xf32>
    %68 = arith.truncf %64 : vector<8x128xf32> to vector<8x128xbf16>
    %cst_16 = arith.constant dense<0.000000e+00> : vector<8x512xf32>
    %69 = tpu.matmul %68, %0, %cst_16 {dimension_numbers = #tpu.dot_dimension_numbers<[1], [0], [0], [1], [0, 0, 1, 1], [], []>} : vector<8x128xbf16>, vector<128x512xbf16>, vector<8x512xf32> -> vector<8x512xf32>
    %70 = arith.addf %67, %69 : vector<8x512xf32>
    %71 = vector.extract_strided_slice %70 {offsets = [0, 0], sizes = [8, 128], strides = [1, 1]} : vector<8x512xf32> to vector<8x128xf32>
    %72 = arith.negf %71 : vector<8x128xf32>
    %73 = math.exp %72 : vector<8x128xf32>
    %cst_17 = arith.constant 1.000000e+00 : f32
    %74 = vector.broadcast %cst_17 : f32 to vector<8x128xf32>
    %75 = arith.addf %74, %73 : vector<8x128xf32>
    %76 = arith.divf %74, %75 : vector<8x128xf32>
    %77 = vector.extract_strided_slice %70 {offsets = [0, 128], sizes = [8, 128], strides = [1, 1]} : vector<8x512xf32> to vector<8x128xf32>
    %78 = arith.negf %77 : vector<8x128xf32>
    %79 = math.exp %78 : vector<8x128xf32>
    %cst_18 = arith.constant 1.000000e+00 : f32
    %80 = vector.broadcast %cst_18 : f32 to vector<8x128xf32>
    %81 = arith.addf %80, %79 : vector<8x128xf32>
    %82 = arith.divf %80, %81 : vector<8x128xf32>
    %83 = vector.extract_strided_slice %70 {offsets = [0, 256], sizes = [8, 128], strides = [1, 1]} : vector<8x512xf32> to vector<8x128xf32>
    %84 = math.tanh %83 : vector<8x128xf32>
    %85 = vector.extract_strided_slice %70 {offsets = [0, 384], sizes = [8, 128], strides = [1, 1]} : vector<8x512xf32> to vector<8x128xf32>
    %86 = arith.negf %85 : vector<8x128xf32>
    %87 = math.exp %86 : vector<8x128xf32>
    %cst_19 = arith.constant 1.000000e+00 : f32
    %88 = vector.broadcast %cst_19 : f32 to vector<8x128xf32>
    %89 = arith.addf %88, %87 : vector<8x128xf32>
    %90 = arith.divf %88, %89 : vector<8x128xf32>
    %91 = arith.mulf %82, %62 : vector<8x128xf32>
    %92 = arith.mulf %76, %84 : vector<8x128xf32>
    %93 = arith.addf %91, %92 : vector<8x128xf32>
    %94 = math.tanh %93 : vector<8x128xf32>
    %95 = arith.mulf %90, %94 : vector<8x128xf32>
    %c3_i32 = arith.constant 3 : i32
    %96 = arith.index_cast %c3_i32 : i32 to index
    %c0_20 = arith.constant 0 : index
    %c0_21 = arith.constant 0 : index
    %97 = vector.load %arg1[%96, %c0_20, %c0_21] : memref<8x8x512xf32, #tpu.memory_space<vmem>>, vector<1x8x512xf32>
    %98 = vector.shape_cast %97 : vector<1x8x512xf32> to vector<8x512xf32>
    %99 = arith.truncf %95 : vector<8x128xf32> to vector<8x128xbf16>
    %cst_22 = arith.constant dense<0.000000e+00> : vector<8x512xf32>
    %100 = tpu.matmul %99, %0, %cst_22 {dimension_numbers = #tpu.dot_dimension_numbers<[1], [0], [0], [1], [0, 0, 1, 1], [], []>} : vector<8x128xbf16>, vector<128x512xbf16>, vector<8x512xf32> -> vector<8x512xf32>
    %101 = arith.addf %98, %100 : vector<8x512xf32>
    %102 = vector.extract_strided_slice %101 {offsets = [0, 0], sizes = [8, 128], strides = [1, 1]} : vector<8x512xf32> to vector<8x128xf32>
    %103 = arith.negf %102 : vector<8x128xf32>
    %104 = math.exp %103 : vector<8x128xf32>
    %cst_23 = arith.constant 1.000000e+00 : f32
    %105 = vector.broadcast %cst_23 : f32 to vector<8x128xf32>
    %106 = arith.addf %105, %104 : vector<8x128xf32>
    %107 = arith.divf %105, %106 : vector<8x128xf32>
    %108 = vector.extract_strided_slice %101 {offsets = [0, 128], sizes = [8, 128], strides = [1, 1]} : vector<8x512xf32> to vector<8x128xf32>
    %109 = arith.negf %108 : vector<8x128xf32>
    %110 = math.exp %109 : vector<8x128xf32>
    %cst_24 = arith.constant 1.000000e+00 : f32
    %111 = vector.broadcast %cst_24 : f32 to vector<8x128xf32>
    %112 = arith.addf %111, %110 : vector<8x128xf32>
    %113 = arith.divf %111, %112 : vector<8x128xf32>
    %114 = vector.extract_strided_slice %101 {offsets = [0, 256], sizes = [8, 128], strides = [1, 1]} : vector<8x512xf32> to vector<8x128xf32>
    %115 = math.tanh %114 : vector<8x128xf32>
    %116 = vector.extract_strided_slice %101 {offsets = [0, 384], sizes = [8, 128], strides = [1, 1]} : vector<8x512xf32> to vector<8x128xf32>
    %117 = arith.negf %116 : vector<8x128xf32>
    %118 = math.exp %117 : vector<8x128xf32>
    %cst_25 = arith.constant 1.000000e+00 : f32
    %119 = vector.broadcast %cst_25 : f32 to vector<8x128xf32>
    %120 = arith.addf %119, %118 : vector<8x128xf32>
    %121 = arith.divf %119, %120 : vector<8x128xf32>
    %122 = arith.mulf %113, %93 : vector<8x128xf32>
    %123 = arith.mulf %107, %115 : vector<8x128xf32>
    %124 = arith.addf %122, %123 : vector<8x128xf32>
    %125 = math.tanh %124 : vector<8x128xf32>
    %126 = arith.mulf %121, %125 : vector<8x128xf32>
    %c4_i32 = arith.constant 4 : i32
    %127 = arith.index_cast %c4_i32 : i32 to index
    %c0_26 = arith.constant 0 : index
    %c0_27 = arith.constant 0 : index
    %128 = vector.load %arg1[%127, %c0_26, %c0_27] : memref<8x8x512xf32, #tpu.memory_space<vmem>>, vector<1x8x512xf32>
    %129 = vector.shape_cast %128 : vector<1x8x512xf32> to vector<8x512xf32>
    %130 = arith.truncf %126 : vector<8x128xf32> to vector<8x128xbf16>
    %cst_28 = arith.constant dense<0.000000e+00> : vector<8x512xf32>
    %131 = tpu.matmul %130, %0, %cst_28 {dimension_numbers = #tpu.dot_dimension_numbers<[1], [0], [0], [1], [0, 0, 1, 1], [], []>} : vector<8x128xbf16>, vector<128x512xbf16>, vector<8x512xf32> -> vector<8x512xf32>
    %132 = arith.addf %129, %131 : vector<8x512xf32>
    %133 = vector.extract_strided_slice %132 {offsets = [0, 0], sizes = [8, 128], strides = [1, 1]} : vector<8x512xf32> to vector<8x128xf32>
    %134 = arith.negf %133 : vector<8x128xf32>
    %135 = math.exp %134 : vector<8x128xf32>
    %cst_29 = arith.constant 1.000000e+00 : f32
    %136 = vector.broadcast %cst_29 : f32 to vector<8x128xf32>
    %137 = arith.addf %136, %135 : vector<8x128xf32>
    %138 = arith.divf %136, %137 : vector<8x128xf32>
    %139 = vector.extract_strided_slice %132 {offsets = [0, 128], sizes = [8, 128], strides = [1, 1]} : vector<8x512xf32> to vector<8x128xf32>
    %140 = arith.negf %139 : vector<8x128xf32>
    %141 = math.exp %140 : vector<8x128xf32>
    %cst_30 = arith.constant 1.000000e+00 : f32
    %142 = vector.broadcast %cst_30 : f32 to vector<8x128xf32>
    %143 = arith.addf %142, %141 : vector<8x128xf32>
    %144 = arith.divf %142, %143 : vector<8x128xf32>
    %145 = vector.extract_strided_slice %132 {offsets = [0, 256], sizes = [8, 128], strides = [1, 1]} : vector<8x512xf32> to vector<8x128xf32>
    %146 = math.tanh %145 : vector<8x128xf32>
    %147 = vector.extract_strided_slice %132 {offsets = [0, 384], sizes = [8, 128], strides = [1, 1]} : vector<8x512xf32> to vector<8x128xf32>
    %148 = arith.negf %147 : vector<8x128xf32>
    %149 = math.exp %148 : vector<8x128xf32>
    %cst_31 = arith.constant 1.000000e+00 : f32
    %150 = vector.broadcast %cst_31 : f32 to vector<8x128xf32>
    %151 = arith.addf %150, %149 : vector<8x128xf32>
    %152 = arith.divf %150, %151 : vector<8x128xf32>
    %153 = arith.mulf %144, %124 : vector<8x128xf32>
    %154 = arith.mulf %138, %146 : vector<8x128xf32>
    %155 = arith.addf %153, %154 : vector<8x128xf32>
    %156 = math.tanh %155 : vector<8x128xf32>
    %157 = arith.mulf %152, %156 : vector<8x128xf32>
    %c5_i32 = arith.constant 5 : i32
    %158 = arith.index_cast %c5_i32 : i32 to index
    %c0_32 = arith.constant 0 : index
    %c0_33 = arith.constant 0 : index
    %159 = vector.load %arg1[%158, %c0_32, %c0_33] : memref<8x8x512xf32, #tpu.memory_space<vmem>>, vector<1x8x512xf32>
    %160 = vector.shape_cast %159 : vector<1x8x512xf32> to vector<8x512xf32>
    %161 = arith.truncf %157 : vector<8x128xf32> to vector<8x128xbf16>
    %cst_34 = arith.constant dense<0.000000e+00> : vector<8x512xf32>
    %162 = tpu.matmul %161, %0, %cst_34 {dimension_numbers = #tpu.dot_dimension_numbers<[1], [0], [0], [1], [0, 0, 1, 1], [], []>} : vector<8x128xbf16>, vector<128x512xbf16>, vector<8x512xf32> -> vector<8x512xf32>
    %163 = arith.addf %160, %162 : vector<8x512xf32>
    %164 = vector.extract_strided_slice %163 {offsets = [0, 0], sizes = [8, 128], strides = [1, 1]} : vector<8x512xf32> to vector<8x128xf32>
    %165 = arith.negf %164 : vector<8x128xf32>
    %166 = math.exp %165 : vector<8x128xf32>
    %cst_35 = arith.constant 1.000000e+00 : f32
    %167 = vector.broadcast %cst_35 : f32 to vector<8x128xf32>
    %168 = arith.addf %167, %166 : vector<8x128xf32>
    %169 = arith.divf %167, %168 : vector<8x128xf32>
    %170 = vector.extract_strided_slice %163 {offsets = [0, 128], sizes = [8, 128], strides = [1, 1]} : vector<8x512xf32> to vector<8x128xf32>
    %171 = arith.negf %170 : vector<8x128xf32>
    %172 = math.exp %171 : vector<8x128xf32>
    %cst_36 = arith.constant 1.000000e+00 : f32
    %173 = vector.broadcast %cst_36 : f32 to vector<8x128xf32>
    %174 = arith.addf %173, %172 : vector<8x128xf32>
    %175 = arith.divf %173, %174 : vector<8x128xf32>
    %176 = vector.extract_strided_slice %163 {offsets = [0, 256], sizes = [8, 128], strides = [1, 1]} : vector<8x512xf32> to vector<8x128xf32>
    %177 = math.tanh %176 : vector<8x128xf32>
    %178 = vector.extract_strided_slice %163 {offsets = [0, 384], sizes = [8, 128], strides = [1, 1]} : vector<8x512xf32> to vector<8x128xf32>
    %179 = arith.negf %178 : vector<8x128xf32>
    %180 = math.exp %179 : vector<8x128xf32>
    %cst_37 = arith.constant 1.000000e+00 : f32
    %181 = vector.broadcast %cst_37 : f32 to vector<8x128xf32>
    %182 = arith.addf %181, %180 : vector<8x128xf32>
    %183 = arith.divf %181, %182 : vector<8x128xf32>
    %184 = arith.mulf %175, %155 : vector<8x128xf32>
    %185 = arith.mulf %169, %177 : vector<8x128xf32>
    %186 = arith.addf %184, %185 : vector<8x128xf32>
    %187 = math.tanh %186 : vector<8x128xf32>
    %188 = arith.mulf %183, %187 : vector<8x128xf32>
    %c6_i32 = arith.constant 6 : i32
    %189 = arith.index_cast %c6_i32 : i32 to index
    %c0_38 = arith.constant 0 : index
    %c0_39 = arith.constant 0 : index
    %190 = vector.load %arg1[%189, %c0_38, %c0_39] : memref<8x8x512xf32, #tpu.memory_space<vmem>>, vector<1x8x512xf32>
    %191 = vector.shape_cast %190 : vector<1x8x512xf32> to vector<8x512xf32>
    %192 = arith.truncf %188 : vector<8x128xf32> to vector<8x128xbf16>
    %cst_40 = arith.constant dense<0.000000e+00> : vector<8x512xf32>
    %193 = tpu.matmul %192, %0, %cst_40 {dimension_numbers = #tpu.dot_dimension_numbers<[1], [0], [0], [1], [0, 0, 1, 1], [], []>} : vector<8x128xbf16>, vector<128x512xbf16>, vector<8x512xf32> -> vector<8x512xf32>
    %194 = arith.addf %191, %193 : vector<8x512xf32>
    %195 = vector.extract_strided_slice %194 {offsets = [0, 0], sizes = [8, 128], strides = [1, 1]} : vector<8x512xf32> to vector<8x128xf32>
    %196 = arith.negf %195 : vector<8x128xf32>
    %197 = math.exp %196 : vector<8x128xf32>
    %cst_41 = arith.constant 1.000000e+00 : f32
    %198 = vector.broadcast %cst_41 : f32 to vector<8x128xf32>
    %199 = arith.addf %198, %197 : vector<8x128xf32>
    %200 = arith.divf %198, %199 : vector<8x128xf32>
    %201 = vector.extract_strided_slice %194 {offsets = [0, 128], sizes = [8, 128], strides = [1, 1]} : vector<8x512xf32> to vector<8x128xf32>
    %202 = arith.negf %201 : vector<8x128xf32>
    %203 = math.exp %202 : vector<8x128xf32>
    %cst_42 = arith.constant 1.000000e+00 : f32
    %204 = vector.broadcast %cst_42 : f32 to vector<8x128xf32>
    %205 = arith.addf %204, %203 : vector<8x128xf32>
    %206 = arith.divf %204, %205 : vector<8x128xf32>
    %207 = vector.extract_strided_slice %194 {offsets = [0, 256], sizes = [8, 128], strides = [1, 1]} : vector<8x512xf32> to vector<8x128xf32>
    %208 = math.tanh %207 : vector<8x128xf32>
    %209 = vector.extract_strided_slice %194 {offsets = [0, 384], sizes = [8, 128], strides = [1, 1]} : vector<8x512xf32> to vector<8x128xf32>
    %210 = arith.negf %209 : vector<8x128xf32>
    %211 = math.exp %210 : vector<8x128xf32>
    %cst_43 = arith.constant 1.000000e+00 : f32
    %212 = vector.broadcast %cst_43 : f32 to vector<8x128xf32>
    %213 = arith.addf %212, %211 : vector<8x128xf32>
    %214 = arith.divf %212, %213 : vector<8x128xf32>
    %215 = arith.mulf %206, %186 : vector<8x128xf32>
    %216 = arith.mulf %200, %208 : vector<8x128xf32>
    %217 = arith.addf %215, %216 : vector<8x128xf32>
    %218 = math.tanh %217 : vector<8x128xf32>
    %219 = arith.mulf %214, %218 : vector<8x128xf32>
    %c7_i32 = arith.constant 7 : i32
    %220 = arith.index_cast %c7_i32 : i32 to index
    %c0_44 = arith.constant 0 : index
    %c0_45 = arith.constant 0 : index
    %221 = vector.load %arg1[%220, %c0_44, %c0_45] : memref<8x8x512xf32, #tpu.memory_space<vmem>>, vector<1x8x512xf32>
    %222 = vector.shape_cast %221 : vector<1x8x512xf32> to vector<8x512xf32>
    %223 = arith.truncf %219 : vector<8x128xf32> to vector<8x128xbf16>
    %cst_46 = arith.constant dense<0.000000e+00> : vector<8x512xf32>
    %224 = tpu.matmul %223, %0, %cst_46 {dimension_numbers = #tpu.dot_dimension_numbers<[1], [0], [0], [1], [0, 0, 1, 1], [], []>} : vector<8x128xbf16>, vector<128x512xbf16>, vector<8x512xf32> -> vector<8x512xf32>
    %225 = arith.addf %222, %224 : vector<8x512xf32>
    %226 = vector.extract_strided_slice %225 {offsets = [0, 0], sizes = [8, 128], strides = [1, 1]} : vector<8x512xf32> to vector<8x128xf32>
    %227 = arith.negf %226 : vector<8x128xf32>
    %228 = math.exp %227 : vector<8x128xf32>
    %cst_47 = arith.constant 1.000000e+00 : f32
    %229 = vector.broadcast %cst_47 : f32 to vector<8x128xf32>
    %230 = arith.addf %229, %228 : vector<8x128xf32>
    %231 = arith.divf %229, %230 : vector<8x128xf32>
    %232 = vector.extract_strided_slice %225 {offsets = [0, 128], sizes = [8, 128], strides = [1, 1]} : vector<8x512xf32> to vector<8x128xf32>
    %233 = arith.negf %232 : vector<8x128xf32>
    %234 = math.exp %233 : vector<8x128xf32>
    %cst_48 = arith.constant 1.000000e+00 : f32
    %235 = vector.broadcast %cst_48 : f32 to vector<8x128xf32>
    %236 = arith.addf %235, %234 : vector<8x128xf32>
    %237 = arith.divf %235, %236 : vector<8x128xf32>
    %238 = vector.extract_strided_slice %225 {offsets = [0, 256], sizes = [8, 128], strides = [1, 1]} : vector<8x512xf32> to vector<8x128xf32>
    %239 = math.tanh %238 : vector<8x128xf32>
    %240 = vector.extract_strided_slice %225 {offsets = [0, 384], sizes = [8, 128], strides = [1, 1]} : vector<8x512xf32> to vector<8x128xf32>
    %241 = arith.negf %240 : vector<8x128xf32>
    %242 = math.exp %241 : vector<8x128xf32>
    %cst_49 = arith.constant 1.000000e+00 : f32
    %243 = vector.broadcast %cst_49 : f32 to vector<8x128xf32>
    %244 = arith.addf %243, %242 : vector<8x128xf32>
    %245 = arith.divf %243, %244 : vector<8x128xf32>
    %246 = arith.mulf %237, %217 : vector<8x128xf32>
    %247 = arith.mulf %231, %239 : vector<8x128xf32>
    %248 = arith.addf %246, %247 : vector<8x128xf32>
    %249 = math.tanh %248 : vector<8x128xf32>
    %250 = arith.mulf %245, %249 : vector<8x128xf32>
    %c8_i32 = arith.constant 8 : i32
    %c0_50 = arith.constant 0 : index
    %c0_51 = arith.constant 0 : index
    %251 = vector.load %arg3[%c0_50, %c0_51] : memref<8x128xf32, #tpu.memory_space<vmem>>, vector<8x128xf32>
    tpu.vector_store %arg3[%c0_50, %c0_51], %250 {strides = array<i32>} : memref<8x128xf32, #tpu.memory_space<vmem>>, vector<8x128xf32>,
    return
  }
  func.func @transform_0(%arg0: i32) -> (i32, i32, i32) {
    %c0_i32 = arith.constant 0 : i32
    %c0_i32_0 = arith.constant 0 : i32
    %c0_i32_1 = arith.constant 0 : i32
    return %c0_i32, %arg0, %c0_i32_0 : i32, i32, i32
  }
  func.func @transform_1(%arg0: i32) -> (i32, i32) {
    %c0_i32 = arith.constant 0 : i32
    %c0_i32_0 = arith.constant 0 : i32
    %c0_i32_1 = arith.constant 0 : i32
    return %c0_i32, %c0_i32_0 : i32, i32
  }
  func.func @transform_2(%arg0: i32) -> (i32, i32) {
    %c0_i32 = arith.constant 0 : i32
    %c0_i32_0 = arith.constant 0 : i32
    return %arg0, %c0_i32 : i32, i32
  }
}

</mosaic_0001>

<llo_original>
// kernel: siam_lstm_forward.1
$region0: #{siam_lstm_forward.1}
  #allocation0 [shape = 'u32[]', space=smem, size = 0x4, offset = 0x4, fixed_abs, tag = 'smem constant byte address 0x4 - core index']
  #allocation1 [shape = 'u32[144,128]{1,0:T(1,128)}', space=vmem, size = 0x12000, scoped, tag = 'internal scratch']
  %s0 = inlined_call_operand.vmem [shape: f32[8,8,512], index: 0, kind: input, shape index: {}]
  %s1 = inlined_call_operand.vmem [shape: bf16[128,512], index: 1, kind: input, shape index: {}]
  %s2 = inlined_call_operand.vmem [shape: f32[8,128], index: 2, kind: output, shape index: {}]
  %s3 = sld [smem:[#allocation0]]
  $region18: #{siam_lstm_forward.1} parent=0
    _
  %s5 = ssub.s32 1, %s3
  %s6 = scalar_select 0, %s5, %s3
  // Predicated region
  $region2: #{siam_lstm_forward.1} parent=0 // pred_check
    _
  $region3: #{siam_lstm_forward.1} parent=0 // pred_check_branch
    %8 = sbr.rel (0) target = $region5
  $region4: #{siam_lstm_forward.1} parent=0 // pred_region
    _
  $region5: #{siam_lstm_forward.1} parent=0 // pred_fallthru
    _
  // Predicated region
  $region6: #{siam_lstm_forward.1} parent=0 // pred_check
    _
  $region7: #{siam_lstm_forward.1} parent=0 // pred_check_branch
    %10 = sbr.rel (0) target = $region9
  $region8: #{siam_lstm_forward.1} parent=0 // pred_region
    _
  $region9: #{siam_lstm_forward.1} parent=0 // pred_fallthru
    _
  %v12 = vld [vmem:[%s1] sm:$0xff]
  %v13 = vld [vmem:[%s1 + $0x8] sm:$0xff]
  %v14 = vld [vmem:[%s1 + $0x10] sm:$0xff]
  %v15 = vld [vmem:[%s1 + $0x18] sm:$0xff]
  %v16 = vld [vmem:[%s1 + $0x20] sm:$0xff]
  %v17 = vld [vmem:[%s1 + $0x28] sm:$0xff]
  %v18 = vld [vmem:[%s1 + $0x30] sm:$0xff]
  %v19 = vld [vmem:[%s1 + $0x38] sm:$0xff]
  %v20 = vld [vmem:[%s1 + $0x40] sm:$0xff]
  %v21 = vld [vmem:[%s1 + $0x48] sm:$0xff]
  %v22 = vld [vmem:[%s1 + $0x50] sm:$0xff]
  %v23 = vld [vmem:[%s1 + $0x58] sm:$0xff]
  %v24 = vld [vmem:[%s1 + $0x60] sm:$0xff]
  %v25 = vld [vmem:[%s1 + $0x68] sm:$0xff]
  %v26 = vld [vmem:[%s1 + $0x70] sm:$0xff]
  %v27 = vld [vmem:[%s1 + $0x78] sm:$0xff]
  %v28 = vld [vmem:[%s1 + $0x80] sm:$0xff]
  %v29 = vld [vmem:[%s1 + $0x88] sm:$0xff]
  %v30 = vld [vmem:[%s1 + $0x90] sm:$0xff]
  %v31 = vld [vmem:[%s1 + $0x98] sm:$0xff]
  %v32 = vld [vmem:[%s1 + $0xa0] sm:$0xff]
  %v33 = vld [vmem:[%s1 + $0xa8] sm:$0xff]
  %v34 = vld [vmem:[%s1 + $0xb0] sm:$0xff]
  %v35 = vld [vmem:[%s1 + $0xb8] sm:$0xff]
  %v36 = vld [vmem:[%s1 + $0xc0] sm:$0xff]
  %v37 = vld [vmem:[%s1 + $0xc8] sm:$0xff]
  %v38 = vld [vmem:[%s1 + $0xd0] sm:$0xff]
  %v39 = vld [vmem:[%s1 + $0xd8] sm:$0xff]
  %v40 = vld [vmem:[%s1 + $0xe0] sm:$0xff]
  %v41 = vld [vmem:[%s1 + $0xe8] sm:$0xff]
  %v42 = vld [vmem:[%s1 + $0xf0] sm:$0xff]
  %v43 = vld [vmem:[%s1 + $0xf8] sm:$0xff]
  %v44 = vld [vmem:[%s0] sm:$0xff]
  %v45 = vld [vmem:[%s0 + $0x8] sm:$0xff]
  %v46 = vld [vmem:[%s0 + $0x10] sm:$0xff]
  %v47 = vld [vmem:[%s0 + $0x18] sm:$0xff]
  %v80 = vunpack.c.l.b16 %v12
  %v81 = vunpack.c.h.b16 %v12
  %v82 = vunpack.c.l.b16 %v13
  %v83 = vunpack.c.h.b16 %v13
  %v84 = vunpack.c.l.b16 %v14
  %v85 = vunpack.c.h.b16 %v14
  %v86 = vunpack.c.l.b16 %v15
  %v87 = vunpack.c.h.b16 %v15
  %v88 = vunpack.c.l.b16 %v16
  %v89 = vunpack.c.h.b16 %v16
  %v90 = vunpack.c.l.b16 %v17
  %v91 = vunpack.c.h.b16 %v17
  %v92 = vunpack.c.l.b16 %v18
  %v93 = vunpack.c.h.b16 %v18
  %v94 = vunpack.c.l.b16 %v19
  %v95 = vunpack.c.h.b16 %v19
  %v96 = vunpack.c.l.b16 %v20
  %v97 = vunpack.c.h.b16 %v20
  %v98 = vunpack.c.l.b16 %v21
  %v99 = vunpack.c.h.b16 %v21
  %v100 = vunpack.c.l.b16 %v22
  %v101 = vunpack.c.h.b16 %v22
  %v102 = vunpack.c.l.b16 %v23
  %v103 = vunpack.c.h.b16 %v23
  %v104 = vunpack.c.l.b16 %v24
  %v105 = vunpack.c.h.b16 %v24
  %v106 = vunpack.c.l.b16 %v25
  %v107 = vunpack.c.h.b16 %v25
  %v108 = vunpack.c.l.b16 %v26
  %v109 = vunpack.c.h.b16 %v26
  %v110 = vunpack.c.l.b16 %v27
  %v111 = vunpack.c.h.b16 %v27
  %v112 = vunpack.c.l.b16 %v28
  %v113 = vunpack.c.h.b16 %v28
  %v114 = vunpack.c.l.b16 %v29
  %v115 = vunpack.c.h.b16 %v29
  %v116 = vunpack.c.l.b16 %v30
  %v117 = vunpack.c.h.b16 %v30
  %v118 = vunpack.c.l.b16 %v31
  %v119 = vunpack.c.h.b16 %v31
  %v120 = vunpack.c.l.b16 %v32
  %v121 = vunpack.c.h.b16 %v32
  %v122 = vunpack.c.l.b16 %v33
  %v123 = vunpack.c.h.b16 %v33
  %v124 = vunpack.c.l.b16 %v34
  %v125 = vunpack.c.h.b16 %v34
  %v126 = vunpack.c.l.b16 %v35
  %v127 = vunpack.c.h.b16 %v35
  %v128 = vunpack.c.l.b16 %v36
  %v129 = vunpack.c.h.b16 %v36
  %v130 = vunpack.c.l.b16 %v37
  %v131 = vunpack.c.h.b16 %v37
  %v132 = vunpack.c.l.b16 %v38
  %v133 = vunpack.c.h.b16 %v38
  %v134 = vunpack.c.l.b16 %v39
  %v135 = vunpack.c.h.b16 %v39
  %v136 = vunpack.c.l.b16 %v40
  %v137 = vunpack.c.h.b16 %v40
  %v138 = vunpack.c.l.b16 %v41
  %v139 = vunpack.c.h.b16 %v41
  %v140 = vunpack.c.l.b16 %v42
  %v141 = vunpack.c.h.b16 %v42
  %v142 = vunpack.c.l.b16 %v43
  %v143 = vunpack.c.h.b16 %v43
  %v144 = vpack.c.b16 %v84, %v80
  %v145 = vpack.c.b16 %v85, %v81
  %v146 = vpack.c.b16 %v86, %v82
  %v147 = vpack.c.b16 %v87, %v83
  %v148 = vpack.c.b16 %v92, %v88
  %v149 = vpack.c.b16 %v93, %v89
  %v150 = vpack.c.b16 %v94, %v90
  %v151 = vpack.c.b16 %v95, %v91
  %v152 = vpack.c.b16 %v100, %v96
  %v153 = vpack.c.b16 %v101, %v97
  %v154 = vpack.c.b16 %v102, %v98
  %v155 = vpack.c.b16 %v103, %v99
  %v156 = vpack.c.b16 %v108, %v104
  %v157 = vpack.c.b16 %v109, %v105
  %v158 = vpack.c.b16 %v110, %v106
  %v159 = vpack.c.b16 %v111, %v107
  %v160 = vpack.c.b16 %v116, %v112
  %v161 = vpack.c.b16 %v117, %v113
  %v162 = vpack.c.b16 %v118, %v114
  %v163 = vpack.c.b16 %v119, %v115
  %v164 = vpack.c.b16 %v124, %v120
  %v165 = vpack.c.b16 %v125, %v121
  %v166 = vpack.c.b16 %v126, %v122
  %v167 = vpack.c.b16 %v127, %v123
  %v168 = vpack.c.b16 %v132, %v128
  %v169 = vpack.c.b16 %v133, %v129
  %v170 = vpack.c.b16 %v134, %v130
  %v171 = vpack.c.b16 %v135, %v131
  %v172 = vpack.c.b16 %v140, %v136
  %v173 = vpack.c.b16 %v141, %v137
  %v174 = vpack.c.b16 %v142, %v138
  %v175 = vpack.c.b16 %v143, %v139
  %208 = vmatprep.subr.bf16.mxu0 %v145
  %209 = vmatpush1.bf16.msra.mxu0 %v144
  %210 = vmatprep.subr.bf16.mxu0 %v149
  %211 = vmatpush1.bf16.msra.mxu0 %v148
  %212 = vmatprep.subr.bf16.mxu0 %v153
  %213 = vmatpush1.bf16.msra.mxu0 %v152
  %214 = vmatprep.subr.bf16.mxu0 %v157
  %215 = vmatpush1.bf16.msra.mxu0 %v156
  %216 = vmatprep.subr.bf16.mxu0 %v161
  %217 = vmatpush1.bf16.msra.mxu0 %v160
  %218 = vmatprep.subr.bf16.mxu0 %v165
  %219 = vmatpush1.bf16.msra.mxu0 %v164
  %220 = vmatprep.subr.bf16.mxu0 %v169
  %221 = vmatpush1.bf16.msra.mxu0 %v168
  %222 = vmatprep.subr.bf16.mxu0 %v173
  %223 = vmatpush1.bf16.msra.mxu0 %v172
  %224 = vmatprep.subr.bf16.mxu0 0
  %225 = vmatpush1.bf16.msra.mxu0 0
  %226 = vmatprep.subr.bf16.mxu0 0
  %227 = vmatpush1.bf16.msra.mxu0 0
  %228 = vmatprep.subr.bf16.mxu0 0
  %229 = vmatpush1.bf16.msra.mxu0 0
  %230 = vmatprep.subr.bf16.mxu0 0
  %231 = vmatpush1.bf16.msra.mxu0 0
  %232 = vmatprep.subr.bf16.mxu0 0
  %233 = vmatpush1.bf16.msra.mxu0 0
  %234 = vmatprep.subr.bf16.mxu0 0
  %235 = vmatpush1.bf16.msra.mxu0 0
  %236 = vmatprep.subr.bf16.mxu0 0
  %237 = vmatpush1.bf16.msra.mxu0 0
  %238 = vmatprep.subr.bf16.mxu0 0
  %239 = vmatpush1.bf16.msra.mxu0 0
  %240 = vmatprep.mubr.bf16.mxu0 0
  %241 = vmatmul.mubr.bf16.gmra.mrb[0].mxu0 0
  %v242 = vpop.f32.mrb[0].mxu0
  %v243 = vadd.f32 0.0, %v242
  %v244 = vpop.f32.mrb[0].mxu0
  %v245 = vadd.f32 0.0, %v244
  %v246 = vpop.f32.mrb[0].mxu0
  %v247 = vpop.f32.mrb[0].mxu0
  %248 = vdwg.mxu0
  %249 = vmatprep.subr.bf16.mxu0 %v147
  %250 = vmatpush1.bf16.msra.mxu0 %v146
  %251 = vmatprep.subr.bf16.mxu0 %v151
  %252 = vmatpush1.bf16.msra.mxu0 %v150
  %253 = vmatprep.subr.bf16.mxu0 %v155
  %254 = vmatpush1.bf16.msra.mxu0 %v154
  %255 = vmatprep.subr.bf16.mxu0 %v159
  %256 = vmatpush1.bf16.msra.mxu0 %v158
  %257 = vmatprep.subr.bf16.mxu0 %v163
  %258 = vmatpush1.bf16.msra.mxu0 %v162
  %259 = vmatprep.subr.bf16.mxu0 %v167
  %260 = vmatpush1.bf16.msra.mxu0 %v166
  %261 = vmatprep.subr.bf16.mxu0 %v171
  %262 = vmatpush1.bf16.msra.mxu0 %v170
  %263 = vmatprep.subr.bf16.mxu0 %v175
  %264 = vmatpush1.bf16.msra.mxu0 %v174
  %265 = vmatprep.subr.bf16.mxu0 0
  %266 = vmatpush1.bf16.msra.mxu0 0
  %267 = vmatprep.subr.bf16.mxu0 0
  %268 = vmatpush1.bf16.msra.mxu0 0
  %269 = vmatprep.subr.bf16.mxu0 0
  %270 = vmatpush1.bf16.msra.mxu0 0
  %271 = vmatprep.subr.bf16.mxu0 0
  %272 = vmatpush1.bf16.msra.mxu0 0
  %273 = vmatprep.subr.bf16.mxu0 0
  %274 = vmatpush1.bf16.msra.mxu0 0
  %275 = vmatprep.subr.bf16.mxu0 0
  %276 = vmatpush1.bf16.msra.mxu0 0
  %277 = vmatprep.subr.bf16.mxu0 0
  %278 = vmatpush1.bf16.msra.mxu0 0
  %279 = vmatprep.subr.bf16.mxu0 0
  %280 = vmatpush1.bf16.msra.mxu0 0
  %281 = vmatprep.mubr.bf16.mxu0 0
  %282 = vmatmul.mubr.bf16.gmra.mrb[0].mxu0 0
  %v283 = vpop.f32.mrb[0].mxu0
  %v284 = vadd.f32 0.0, %v283
  %v285 = vpop.f32.mrb[0].mxu0
  %v286 = vadd.f32 0.0, %v285
  %v287 = vpop.f32.mrb[0].mxu0
  %v288 = vpop.f32.mrb[0].mxu0
  %289 = vdwg.mxu0
  %v290 = vadd.f32 %v44, %v243
  %v291 = vadd.f32 %v45, %v245
  %v292 = vadd.f32 %v46, %v284
  %v293 = vadd.f32 %v47, %v286
  %v294 = vxor.u32 %v290, 2147483648
  %v295 = vmul.f32 %v294, 1.442695
  %v296 = vpow.pop %v295
  %v297 = vadd.f32 %v296, 1.0
  %v298 = vrcp.pop %v297
  %v299 = vmul.f32 1.0, %v298
  %v300 = vxor.u32 %v291, 2147483648
  %v301 = vmul.f32 %v300, 1.442695
  %v302 = vpow.pop %v301
  %v303 = vadd.f32 %v302, 1.0
  %v304 = vrcp.pop %v303
  %v305 = vmul.f32 1.0, %v304
  %v306 = vtanh.pop %v292
  %v307 = vxor.u32 %v293, 2147483648
  %v308 = vmul.f32 %v307, 1.442695
  %v309 = vpow.pop %v308
  %v310 = vadd.f32 %v309, 1.0
  %v311 = vrcp.pop %v310
  %v312 = vmul.f32 1.0, %v311
  %v313 = vmul.f32 %v305, 0.0
  %v314 = vmul.f32 %v299, %v306
  %v315 = vadd.f32 %v313, %v314
  %v316 = vtanh.pop %v315
  %v317 = vmul.f32 %v312, %v316
  %s318 = scalar_lea.vmem %s0, 32
  %v319 = vld [vmem:[%s318] sm:$0xff]
  %v320 = vld [vmem:[%s318 + $0x8] sm:$0xff]
  %v321 = vld [vmem:[%s318 + $0x10] sm:$0xff]
  %v322 = vld [vmem:[%s318 + $0x18] sm:$0xff]
  %v323 = vpack.c.bf16 %v317, %v317
  %324 = vmatprep.subr.bf16.mxu0 %v145
  %325 = vmatpush1.bf16.msra.mxu0 %v144
  %326 = vmatprep.subr.bf16.mxu0 %v149
  %327 = vmatpush1.bf16.msra.mxu0 %v148
  %328 = vmatprep.subr.bf16.mxu0 %v153
  %329 = vmatpush1.bf16.msra.mxu0 %v152
  %330 = vmatprep.subr.bf16.mxu0 %v157
  %331 = vmatpush1.bf16.msra.mxu0 %v156
  %332 = vmatprep.subr.bf16.mxu0 %v161
  %333 = vmatpush1.bf16.msra.mxu0 %v160
  %334 = vmatprep.subr.bf16.mxu0 %v165
  %335 = vmatpush1.bf16.msra.mxu0 %v164
  %336 = vmatprep.subr.bf16.mxu0 %v169
  %337 = vmatpush1.bf16.msra.mxu0 %v168
  %338 = vmatprep.subr.bf16.mxu0 %v173
  %339 = vmatpush1.bf16.msra.mxu0 %v172
  %340 = vmatprep.subr.bf16.mxu0 0
  %341 = vmatpush1.bf16.msra.mxu0 0
  %342 = vmatprep.subr.bf16.mxu0 0
  %343 = vmatpush1.bf16.msra.mxu0 0
  %344 = vmatprep.subr.bf16.mxu0 0
  %345 = vmatpush1.bf16.msra.mxu0 0
  %346 = vmatprep.subr.bf16.mxu0 0
  %347 = vmatpush1.bf16.msra.mxu0 0
  %348 = vmatprep.subr.bf16.mxu0 0
  %349 = vmatpush1.bf16.msra.mxu0 0
  %350 = vmatprep.subr.bf16.mxu0 0
  %351 = vmatpush1.bf16.msra.mxu0 0
  %352 = vmatprep.subr.bf16.mxu0 0
  %353 = vmatpush1.bf16.msra.mxu0 0
  %354 = vmatprep.subr.bf16.mxu0 0
  %355 = vmatpush1.bf16.msra.mxu0 0
  %356 = vmatprep.mubr.bf16.mxu0 0
  %357 = vmatmul.mubr.bf16.gmra.mrb[0].mxu0 %v323
  %v358 = vpop.f32.mrb[0].mxu0
  %v359 = vadd.f32 0.0, %v358
  %v360 = vpop.f32.mrb[0].mxu0
  %v361 = vadd.f32 0.0, %v360
  %v362 = vpop.f32.mrb[0].mxu0
  %v363 = vpop.f32.mrb[0].mxu0
  %364 = vdwg.mxu0
  %365 = vmatprep.subr.bf16.mxu0 %v147
  %366 = vmatpush1.bf16.msra.mxu0 %v146
  %367 = vmatprep.subr.bf16.mxu0 %v151
  %368 = vmatpush1.bf16.msra.mxu0 %v150
  %369 = vmatprep.subr.bf16.mxu0 %v155
  %370 = vmatpush1.bf16.msra.mxu0 %v154
  %371 = vmatprep.subr.bf16.mxu0 %v159
  %372 = vmatpush1.bf16.msra.mxu0 %v158
  %373 = vmatprep.subr.bf16.mxu0 %v163
  %374 = vmatpush1.bf16.msra.mxu0 %v162
  %375 = vmatprep.subr.bf16.mxu0 %v167
  %376 = vmatpush1.bf16.msra.mxu0 %v166
  %377 = vmatprep.subr.bf16.mxu0 %v171
  %378 = vmatpush1.bf16.msra.mxu0 %v170
  %379 = vmatprep.subr.bf16.mxu0 %v175
  %380 = vmatpush1.bf16.msra.mxu0 %v174
  %381 = vmatprep.subr.bf16.mxu0 0
  %382 = vmatpush1.bf16.msra.mxu0 0
  %383 = vmatprep.subr.bf16.mxu0 0
  %384 = vmatpush1.bf16.msra.mxu0 0
  %385 = vmatprep.subr.bf16.mxu0 0
  %386 = vmatpush1.bf16.msra.mxu0 0
  %387 = vmatprep.subr.bf16.mxu0 0
  %388 = vmatpush1.bf16.msra.mxu0 0
  %389 = vmatprep.subr.bf16.mxu0 0
  %390 = vmatpush1.bf16.msra.mxu0 0
  %391 = vmatprep.subr.bf16.mxu0 0
  %392 = vmatpush1.bf16.msra.mxu0 0
  %393 = vmatprep.subr.bf16.mxu0 0
  %394 = vmatpush1.bf16.msra.mxu0 0
  %395 = vmatprep.subr.bf16.mxu0 0
  %396 = vmatpush1.bf16.msra.mxu0 0
  %397 = vmatprep.mubr.bf16.mxu0 0
  %398 = vmatmul.mubr.bf16.gmra.mrb[0].mxu0 %v323
  %v399 = vpop.f32.mrb[0].mxu0
  %v400 = vadd.f32 0.0, %v399
  %v401 = vpop.f32.mrb[0].mxu0
  %v402 = vadd.f32 0.0, %v401
  %v403 = vpop.f32.mrb[0].mxu0
  %v404 = vpop.f32.mrb[0].mxu0
  %405 = vdwg.mxu0
  %v406 = vadd.f32 %v319, %v359
  %v407 = vadd.f32 %v320, %v361
  %v408 = vadd.f32 %v321, %v400
  %v409 = vadd.f32 %v322, %v402
  %v410 = vxor.u32 %v406, 2147483648
  %v411 = vmul.f32 %v410, 1.442695
  %v412 = vpow.pop %v411
  %v413 = vadd.f32 %v412, 1.0
  %v414 = vrcp.pop %v413
  %v415 = vmul.f32 1.0, %v414
  %v416 = vxor.u32 %v407, 2147483648
  %v417 = vmul.f32 %v416, 1.442695
  %v418 = vpow.pop %v417
  %v419 = vadd.f32 %v418, 1.0
  %v420 = vrcp.pop %v419
  %v421 = vmul.f32 1.0, %v420
  %v422 = vtanh.pop %v408
  %v423 = vxor.u32 %v409, 2147483648
  %v424 = vmul.f32 %v423, 1.442695
  %v425 = vpow.pop %v424
  %v426 = vadd.f32 %v425, 1.0
  %v427 = vrcp.pop %v426
  %v428 = vmul.f32 1.0, %v427
  %v429 = vmul.f32 %v421, %v315
  %v430 = vmul.f32 %v415, %v422
  %v431 = vadd.f32 %v429, %v430
  %v432 = vtanh.pop %v431
  %v433 = vmul.f32 %v428, %v432
  %s434 = scalar_lea.vmem %s0, 64
  %v435 = vld [vmem:[%s434] sm:$0xff]
  %v436 = vld [vmem:[%s434 + $0x8] sm:$0xff]
  %v437 = vld [vmem:[%s434 + $0x10] sm:$0xff]
  %v438 = vld [vmem:[%s434 + $0x18] sm:$0xff]
  %v439 = vpack.c.bf16 %v433, %v433
  %440 = vmatprep.subr.bf16.mxu0 %v145
  %441 = vmatpush1.bf16.msra.mxu0 %v144
  %442 = vmatprep.subr.bf16.mxu0 %v149
  %443 = vmatpush1.bf16.msra.mxu0 %v148
  %444 = vmatprep.subr.bf16.mxu0 %v153
  %445 = vmatpush1.bf16.msra.mxu0 %v152
  %446 = vmatprep.subr.bf16.mxu0 %v157
  %447 = vmatpush1.bf16.msra.mxu0 %v156
  %448 = vmatprep.subr.bf16.mxu0 %v161
  %449 = vmatpush1.bf16.msra.mxu0 %v160
  %450 = vmatprep.subr.bf16.mxu0 %v165
  %451 = vmatpush1.bf16.msra.mxu0 %v164
  %452 = vmatprep.subr.bf16.mxu0 %v169
  %453 = vmatpush1.bf16.msra.mxu0 %v168
  %454 = vmatprep.subr.bf16.mxu0 %v173
  %455 = vmatpush1.bf16.msra.mxu0 %v172
  %456 = vmatprep.subr.bf16.mxu0 0
  %457 = vmatpush1.bf16.msra.mxu0 0
  %458 = vmatprep.subr.bf16.mxu0 0
  %459 = vmatpush1.bf16.msra.mxu0 0
  %460 = vmatprep.subr.bf16.mxu0 0
  %461 = vmatpush1.bf16.msra.mxu0 0
  %462 = vmatprep.subr.bf16.mxu0 0
  %463 = vmatpush1.bf16.msra.mxu0 0
  %464 = vmatprep.subr.bf16.mxu0 0
  %465 = vmatpush1.bf16.msra.mxu0 0
  %466 = vmatprep.subr.bf16.mxu0 0
  %467 = vmatpush1.bf16.msra.mxu0 0
  %468 = vmatprep.subr.bf16.mxu0 0
  %469 = vmatpush1.bf16.msra.mxu0 0
  %470 = vmatprep.subr.bf16.mxu0 0
  %471 = vmatpush1.bf16.msra.mxu0 0
  %472 = vmatprep.mubr.bf16.mxu0 0
  %473 = vmatmul.mubr.bf16.gmra.mrb[0].mxu0 %v439
  %v474 = vpop.f32.mrb[0].mxu0
  %v475 = vadd.f32 0.0, %v474
  %v476 = vpop.f32.mrb[0].mxu0
  %v477 = vadd.f32 0.0, %v476
  %v478 = vpop.f32.mrb[0].mxu0
  %v479 = vpop.f32.mrb[0].mxu0
  %480 = vdwg.mxu0
  %481 = vmatprep.subr.bf16.mxu0 %v147
  %482 = vmatpush1.bf16.msra.mxu0 %v146
  %483 = vmatprep.subr.bf16.mxu0 %v151
  %484 = vmatpush1.bf16.msra.mxu0 %v150
  %485 = vmatprep.subr.bf16.mxu0 %v155
  %486 = vmatpush1.bf16.msra.mxu0 %v154
  %487 = vmatprep.subr.bf16.mxu0 %v159
  %488 = vmatpush1.bf16.msra.mxu0 %v158
  %489 = vmatprep.subr.bf16.mxu0 %v163
  %490 = vmatpush1.bf16.msra.mxu0 %v162
  %491 = vmatprep.subr.bf16.mxu0 %v167
  %492 = vmatpush1.bf16.msra.mxu0 %v166
  %493 = vmatprep.subr.bf16.mxu0 %v171
  %494 = vmatpush1.bf16.msra.mxu0 %v170
  %495 = vmatprep.subr.bf16.mxu0 %v175
  %496 = vmatpush1.bf16.msra.mxu0 %v174
  %497 = vmatprep.subr.bf16.mxu0 0
  %498 = vmatpush1.bf16.msra.mxu0 0
  %499 = vmatprep.subr.bf16.mxu0 0
  %500 = vmatpush1.bf16.msra.mxu0 0
  %501 = vmatprep.subr.bf16.mxu0 0
  %502 = vmatpush1.bf16.msra.mxu0 0
  %503 = vmatprep.subr.bf16.mxu0 0
  %504 = vmatpush1.bf16.msra.mxu0 0
  %505 = vmatprep.subr.bf16.mxu0 0
  %506 = vmatpush1.bf16.msra.mxu0 0
  %507 = vmatprep.subr.bf16.mxu0 0
  %508 = vmatpush1.bf16.msra.mxu0 0
  %509 = vmatprep.subr.bf16.mxu0 0
  %510 = vmatpush1.bf16.msra.mxu0 0
  %511 = vmatprep.subr.bf16.mxu0 0
  %512 = vmatpush1.bf16.msra.mxu0 0
  %513 = vmatprep.mubr.bf16.mxu0 0
  %514 = vmatmul.mubr.bf16.gmra.mrb[0].mxu0 %v439
  %v515 = vpop.f32.mrb[0].mxu0
  %v516 = vadd.f32 0.0, %v515
  %v517 = vpop.f32.mrb[0].mxu0
  %v518 = vadd.f32 0.0, %v517
  %v519 = vpop.f32.mrb[0].mxu0
  %v520 = vpop.f32.mrb[0].mxu0
  %521 = vdwg.mxu0
  %v522 = vadd.f32 %v435, %v475
  %v523 = vadd.f32 %v436, %v477
  %v524 = vadd.f32 %v437, %v516
  %v525 = vadd.f32 %v438, %v518
  %v526 = vxor.u32 %v522, 2147483648
  %v527 = vmul.f32 %v526, 1.442695
  %v528 = vpow.pop %v527
  %v529 = vadd.f32 %v528, 1.0
  %v530 = vrcp.pop %v529
  %v531 = vmul.f32 1.0, %v530
  %v532 = vxor.u32 %v523, 2147483648
  %v533 = vmul.f32 %v532, 1.442695
  %v534 = vpow.pop %v533
  %v535 = vadd.f32 %v534, 1.0
  %v536 = vrcp.pop %v535
  %v537 = vmul.f32 1.0, %v536
  %v538 = vtanh.pop %v524
  %v539 = vxor.u32 %v525, 2147483648
  %v540 = vmul.f32 %v539, 1.442695
  %v541 = vpow.pop %v540
  %v542 = vadd.f32 %v541, 1.0
  %v543 = vrcp.pop %v542
  %v544 = vmul.f32 1.0, %v543
  %v545 = vmul.f32 %v537, %v431
  %v546 = vmul.f32 %v531, %v538
  %v547 = vadd.f32 %v545, %v546
  %v548 = vtanh.pop %v547
  %v549 = vmul.f32 %v544, %v548
  %s550 = scalar_lea.vmem %s0, 96
  %v551 = vld [vmem:[%s550] sm:$0xff]
  %v552 = vld [vmem:[%s550 + $0x8] sm:$0xff]
  %v553 = vld [vmem:[%s550 + $0x10] sm:$0xff]
  %v554 = vld [vmem:[%s550 + $0x18] sm:$0xff]
  %v555 = vpack.c.bf16 %v549, %v549
  %556 = vmatprep.subr.bf16.mxu0 %v145
  %557 = vmatpush1.bf16.msra.mxu0 %v144
  %558 = vmatprep.subr.bf16.mxu0 %v149
  %559 = vmatpush1.bf16.msra.mxu0 %v148
  %560 = vmatprep.subr.bf16.mxu0 %v153
  %561 = vmatpush1.bf16.msra.mxu0 %v152
  %562 = vmatprep.subr.bf16.mxu0 %v157
  %563 = vmatpush1.bf16.msra.mxu0 %v156
  %564 = vmatprep.subr.bf16.mxu0 %v161
  %565 = vmatpush1.bf16.msra.mxu0 %v160
  %566 = vmatprep.subr.bf16.mxu0 %v165
  %567 = vmatpush1.bf16.msra.mxu0 %v164
  %568 = vmatprep.subr.bf16.mxu0 %v169
  %569 = vmatpush1.bf16.msra.mxu0 %v168
  %570 = vmatprep.subr.bf16.mxu0 %v173
  %571 = vmatpush1.bf16.msra.mxu0 %v172
  %572 = vmatprep.subr.bf16.mxu0 0
  %573 = vmatpush1.bf16.msra.mxu0 0
  %574 = vmatprep.subr.bf16.mxu0 0
  %575 = vmatpush1.bf16.msra.mxu0 0
  %576 = vmatprep.subr.bf16.mxu0 0
  %577 = vmatpush1.bf16.msra.mxu0 0
  %578 = vmatprep.subr.bf16.mxu0 0
  %579 = vmatpush1.bf16.msra.mxu0 0
  %580 = vmatprep.subr.bf16.mxu0 0
  %581 = vmatpush1.bf16.msra.mxu0 0
  %582 = vmatprep.subr.bf16.mxu0 0
  %583 = vmatpush1.bf16.msra.mxu0 0
  %584 = vmatprep.subr.bf16.mxu0 0
  %585 = vmatpush1.bf16.msra.mxu0 0
  %586 = vmatprep.subr.bf16.mxu0 0
  %587 = vmatpush1.bf16.msra.mxu0 0
  %588 = vmatprep.mubr.bf16.mxu0 0
  %589 = vmatmul.mubr.bf16.gmra.mrb[0].mxu0 %v555
  %v590 = vpop.f32.mrb[0].mxu0
  %v591 = vadd.f32 0.0, %v590
  %v592 = vpop.f32.mrb[0].mxu0
  %v593 = vadd.f32 0.0, %v592
  %v594 = vpop.f32.mrb[0].mxu0
  %v595 = vpop.f32.mrb[0].mxu0
  %596 = vdwg.mxu0
  %597 = vmatprep.subr.bf16.mxu0 %v147
  %598 = vmatpush1.bf16.msra.mxu0 %v146
  %599 = vmatprep.subr.bf16.mxu0 %v151
  %600 = vmatpush1.bf16.msra.mxu0 %v150
  %601 = vmatprep.subr.bf16.mxu0 %v155
  %602 = vmatpush1.bf16.msra.mxu0 %v154
  %603 = vmatprep.subr.bf16.mxu0 %v159
  %604 = vmatpush1.bf16.msra.mxu0 %v158
  %605 = vmatprep.subr.bf16.mxu0 %v163
  %606 = vmatpush1.bf16.msra.mxu0 %v162
  %607 = vmatprep.subr.bf16.mxu0 %v167
  %608 = vmatpush1.bf16.msra.mxu0 %v166
  %609 = vmatprep.subr.bf16.mxu0 %v171
  %610 = vmatpush1.bf16.msra.mxu0 %v170
  %611 = vmatprep.subr.bf16.mxu0 %v175
  %612 = vmatpush1.bf16.msra.mxu0 %v174
  %613 = vmatprep.subr.bf16.mxu0 0
  %614 = vmatpush1.bf16.msra.mxu0 0
  %615 = vmatprep.subr.bf16.mxu0 0
  %616 = vmatpush1.bf16.msra.mxu0 0
  %617 = vmatprep.subr.bf16.mxu0 0
  %618 = vmatpush1.bf16.msra.mxu0 0
  %619 = vmatprep.subr.bf16.mxu0 0
  %620 = vmatpush1.bf16.msra.mxu0 0
  %621 = vmatprep.subr.bf16.mxu0 0
  %622 = vmatpush1.bf16.msra.mxu0 0
  %623 = vmatprep.subr.bf16.mxu0 0
  %624 = vmatpush1.bf16.msra.mxu0 0
  %625 = vmatprep.subr.bf16.mxu0 0
  %626 = vmatpush1.bf16.msra.mxu0 0
  %627 = vmatprep.subr.bf16.mxu0 0
  %628 = vmatpush1.bf16.msra.mxu0 0
  %629 = vmatprep.mubr.bf16.mxu0 0
  %630 = vmatmul.mubr.bf16.gmra.mrb[0].mxu0 %v555
  %v631 = vpop.f32.mrb[0].mxu0
  %v632 = vadd.f32 0.0, %v631
  %v633 = vpop.f32.mrb[0].mxu0
  %v634 = vadd.f32 0.0, %v633
  %v635 = vpop.f32.mrb[0].mxu0
  %v636 = vpop.f32.mrb[0].mxu0
  %637 = vdwg.mxu0
  %v638 = vadd.f32 %v551, %v591
  %v639 = vadd.f32 %v552, %v593
  %v640 = vadd.f32 %v553, %v632
  %v641 = vadd.f32 %v554, %v634
  %v642 = vxor.u32 %v638, 2147483648
  %v643 = vmul.f32 %v642, 1.442695
  %v644 = vpow.pop %v643
  %v645 = vadd.f32 %v644, 1.0
  %v646 = vrcp.pop %v645
  %v647 = vmul.f32 1.0, %v646
  %v648 = vxor.u32 %v639, 2147483648
  %v649 = vmul.f32 %v648, 1.442695
  %v650 = vpow.pop %v649
  %v651 = vadd.f32 %v650, 1.0
  %v652 = vrcp.pop %v651
  %v653 = vmul.f32 1.0, %v652
  %v654 = vtanh.pop %v640
  %v655 = vxor.u32 %v641, 2147483648
  %v656 = vmul.f32 %v655, 1.442695
  %v657 = vpow.pop %v656
  %v658 = vadd.f32 %v657, 1.0
  %v659 = vrcp.pop %v658
  %v660 = vmul.f32 1.0, %v659
  %v661 = vmul.f32 %v653, %v547
  %v662 = vmul.f32 %v647, %v654
  %v663 = vadd.f32 %v661, %v662
  %v664 = vtanh.pop %v663
  %v665 = vmul.f32 %v660, %v664
  %s666 = scalar_lea.vmem %s0, 128
  %v667 = vld [vmem:[%s666] sm:$0xff]
  %v668 = vld [vmem:[%s666 + $0x8] sm:$0xff]
  %v669 = vld [vmem:[%s666 + $0x10] sm:$0xff]
  %v670 = vld [vmem:[%s666 + $0x18] sm:$0xff]
  %v671 = vpack.c.bf16 %v665, %v665
  %672 = vmatprep.subr.bf16.mxu0 %v145
  %673 = vmatpush1.bf16.msra.mxu0 %v144
  %674 = vmatprep.subr.bf16.mxu0 %v149
  %675 = vmatpush1.bf16.msra.mxu0 %v148
  %676 = vmatprep.subr.bf16.mxu0 %v153
  %677 = vmatpush1.bf16.msra.mxu0 %v152
  %678 = vmatprep.subr.bf16.mxu0 %v157
  %679 = vmatpush1.bf16.msra.mxu0 %v156
  %680 = vmatprep.subr.bf16.mxu0 %v161
  %681 = vmatpush1.bf16.msra.mxu0 %v160
  %682 = vmatprep.subr.bf16.mxu0 %v165
  %683 = vmatpush1.bf16.msra.mxu0 %v164
  %684 = vmatprep.subr.bf16.mxu0 %v169
  %685 = vmatpush1.bf16.msra.mxu0 %v168
  %686 = vmatprep.subr.bf16.mxu0 %v173
  %687 = vmatpush1.bf16.msra.mxu0 %v172
  %688 = vmatprep.subr.bf16.mxu0 0
  %689 = vmatpush1.bf16.msra.mxu0 0
  %690 = vmatprep.subr.bf16.mxu0 0
  %691 = vmatpush1.bf16.msra.mxu0 0
  %692 = vmatprep.subr.bf16.mxu0 0
  %693 = vmatpush1.bf16.msra.mxu0 0
  %694 = vmatprep.subr.bf16.mxu0 0
  %695 = vmatpush1.bf16.msra.mxu0 0
  %696 = vmatprep.subr.bf16.mxu0 0
  %697 = vmatpush1.bf16.msra.mxu0 0
  %698 = vmatprep.subr.bf16.mxu0 0
  %699 = vmatpush1.bf16.msra.mxu0 0
  %700 = vmatprep.subr.bf16.mxu0 0
  %701 = vmatpush1.bf16.msra.mxu0 0
  %702 = vmatprep.subr.bf16.mxu0 0
  %703 = vmatpush1.bf16.msra.mxu0 0
  %704 = vmatprep.mubr.bf16.mxu0 0
  %705 = vmatmul.mubr.bf16.gmra.mrb[0].mxu0 %v671
  %v706 = vpop.f32.mrb[0].mxu0
  %v707 = vadd.f32 0.0, %v706
  %v708 = vpop.f32.mrb[0].mxu0
  %v709 = vadd.f32 0.0, %v708
  %v710 = vpop.f32.mrb[0].mxu0
  %v711 = vpop.f32.mrb[0].mxu0
  %712 = vdwg.mxu0
  %713 = vmatprep.subr.bf16.mxu0 %v147
  %714 = vmatpush1.bf16.msra.mxu0 %v146
  %715 = vmatprep.subr.bf16.mxu0 %v151
  %716 = vmatpush1.bf16.msra.mxu0 %v150
  %717 = vmatprep.subr.bf16.mxu0 %v155
  %718 = vmatpush1.bf16.msra.mxu0 %v154
  %719 = vmatprep.subr.bf16.mxu0 %v159
  %720 = vmatpush1.bf16.msra.mxu0 %v158
  %721 = vmatprep.subr.bf16.mxu0 %v163
  %722 = vmatpush1.bf16.msra.mxu0 %v162
  %723 = vmatprep.subr.bf16.mxu0 %v167
  %724 = vmatpush1.bf16.msra.mxu0 %v166
  %725 = vmatprep.subr.bf16.mxu0 %v171
  %726 = vmatpush1.bf16.msra.mxu0 %v170
  %727 = vmatprep.subr.bf16.mxu0 %v175
  %728 = vmatpush1.bf16.msra.mxu0 %v174
  %729 = vmatprep.subr.bf16.mxu0 0
  %730 = vmatpush1.bf16.msra.mxu0 0
  %731 = vmatprep.subr.bf16.mxu0 0
  %732 = vmatpush1.bf16.msra.mxu0 0
  %733 = vmatprep.subr.bf16.mxu0 0
  %734 = vmatpush1.bf16.msra.mxu0 0
  %735 = vmatprep.subr.bf16.mxu0 0
  %736 = vmatpush1.bf16.msra.mxu0 0
  %737 = vmatprep.subr.bf16.mxu0 0
  %738 = vmatpush1.bf16.msra.mxu0 0
  %739 = vmatprep.subr.bf16.mxu0 0
  %740 = vmatpush1.bf16.msra.mxu0 0
  %741 = vmatprep.subr.bf16.mxu0 0
  %742 = vmatpush1.bf16.msra.mxu0 0
  %743 = vmatprep.subr.bf16.mxu0 0
  %744 = vmatpush1.bf16.msra.mxu0 0
  %745 = vmatprep.mubr.bf16.mxu0 0
  %746 = vmatmul.mubr.bf16.gmra.mrb[0].mxu0 %v671
  %v747 = vpop.f32.mrb[0].mxu0
  %v748 = vadd.f32 0.0, %v747
  %v749 = vpop.f32.mrb[0].mxu0
  %v750 = vadd.f32 0.0, %v749
  %v751 = vpop.f32.mrb[0].mxu0
  %v752 = vpop.f32.mrb[0].mxu0
  %753 = vdwg.mxu0
  %v754 = vadd.f32 %v667, %v707
  %v755 = vadd.f32 %v668, %v709
  %v756 = vadd.f32 %v669, %v748
  %v757 = vadd.f32 %v670, %v750
  %v758 = vxor.u32 %v754, 2147483648
  %v759 = vmul.f32 %v758, 1.442695
  %v760 = vpow.pop %v759
  %v761 = vadd.f32 %v760, 1.0
  %v762 = vrcp.pop %v761
  %v763 = vmul.f32 1.0, %v762
  %v764 = vxor.u32 %v755, 2147483648
  %v765 = vmul.f32 %v764, 1.442695
  %v766 = vpow.pop %v765
  %v767 = vadd.f32 %v766, 1.0
  %v768 = vrcp.pop %v767
  %v769 = vmul.f32 1.0, %v768
  %v770 = vtanh.pop %v756
  %v771 = vxor.u32 %v757, 2147483648
  %v772 = vmul.f32 %v771, 1.442695
  %v773 = vpow.pop %v772
  %v774 = vadd.f32 %v773, 1.0
  %v775 = vrcp.pop %v774
  %v776 = vmul.f32 1.0, %v775
  %v777 = vmul.f32 %v769, %v663
  %v778 = vmul.f32 %v763, %v770
  %v779 = vadd.f32 %v777, %v778
  %v780 = vtanh.pop %v779
  %v781 = vmul.f32 %v776, %v780
  %s782 = scalar_lea.vmem %s0, 160
  %v783 = vld [vmem:[%s782] sm:$0xff]
  %v784 = vld [vmem:[%s782 + $0x8] sm:$0xff]
  %v785 = vld [vmem:[%s782 + $0x10] sm:$0xff]
  %v786 = vld [vmem:[%s782 + $0x18] sm:$0xff]
  %v787 = vpack.c.bf16 %v781, %v781
  %788 = vmatprep.subr.bf16.mxu0 %v145
  %789 = vmatpush1.bf16.msra.mxu0 %v144
  %790 = vmatprep.subr.bf16.mxu0 %v149
  %791 = vmatpush1.bf16.msra.mxu0 %v148
  %792 = vmatprep.subr.bf16.mxu0 %v153
  %793 = vmatpush1.bf16.msra.mxu0 %v152
  %794 = vmatprep.subr.bf16.mxu0 %v157
  %795 = vmatpush1.bf16.msra.mxu0 %v156
  %796 = vmatprep.subr.bf16.mxu0 %v161
  %797 = vmatpush1.bf16.msra.mxu0 %v160
  %798 = vmatprep.subr.bf16.mxu0 %v165
  %799 = vmatpush1.bf16.msra.mxu0 %v164
  %800 = vmatprep.subr.bf16.mxu0 %v169
  %801 = vmatpush1.bf16.msra.mxu0 %v168
  %802 = vmatprep.subr.bf16.mxu0 %v173
  %803 = vmatpush1.bf16.msra.mxu0 %v172
  %804 = vmatprep.subr.bf16.mxu0 0
  %805 = vmatpush1.bf16.msra.mxu0 0
  %806 = vmatprep.subr.bf16.mxu0 0
  %807 = vmatpush1.bf16.msra.mxu0 0
  %808 = vmatprep.subr.bf16.mxu0 0
  %809 = vmatpush1.bf16.msra.mxu0 0
  %810 = vmatprep.subr.bf16.mxu0 0
  %811 = vmatpush1.bf16.msra.mxu0 0
  %812 = vmatprep.subr.bf16.mxu0 0
  %813 = vmatpush1.bf16.msra.mxu0 0
  %814 = vmatprep.subr.bf16.mxu0 0
  %815 = vmatpush1.bf16.msra.mxu0 0
  %816 = vmatprep.subr.bf16.mxu0 0
  %817 = vmatpush1.bf16.msra.mxu0 0
  %818 = vmatprep.subr.bf16.mxu0 0
  %819 = vmatpush1.bf16.msra.mxu0 0
  %820 = vmatprep.mubr.bf16.mxu0 0
  %821 = vmatmul.mubr.bf16.gmra.mrb[0].mxu0 %v787
  %v822 = vpop.f32.mrb[0].mxu0
  %v823 = vadd.f32 0.0, %v822
  %v824 = vpop.f32.mrb[0].mxu0
  %v825 = vadd.f32 0.0, %v824
  %v826 = vpop.f32.mrb[0].mxu0
  %v827 = vpop.f32.mrb[0].mxu0
  %828 = vdwg.mxu0
  %829 = vmatprep.subr.bf16.mxu0 %v147
  %830 = vmatpush1.bf16.msra.mxu0 %v146
  %831 = vmatprep.subr.bf16.mxu0 %v151
  %832 = vmatpush1.bf16.msra.mxu0 %v150
  %833 = vmatprep.subr.bf16.mxu0 %v155
  %834 = vmatpush1.bf16.msra.mxu0 %v154
  %835 = vmatprep.subr.bf16.mxu0 %v159
  %836 = vmatpush1.bf16.msra.mxu0 %v158
  %837 = vmatprep.subr.bf16.mxu0 %v163
  %838 = vmatpush1.bf16.msra.mxu0 %v162
  %839 = vmatprep.subr.bf16.mxu0 %v167
  %840 = vmatpush1.bf16.msra.mxu0 %v166
  %841 = vmatprep.subr.bf16.mxu0 %v171
  %842 = vmatpush1.bf16.msra.mxu0 %v170
  %843 = vmatprep.subr.bf16.mxu0 %v175
  %844 = vmatpush1.bf16.msra.mxu0 %v174
  %845 = vmatprep.subr.bf16.mxu0 0
  %846 = vmatpush1.bf16.msra.mxu0 0
  %847 = vmatprep.subr.bf16.mxu0 0
  %848 = vmatpush1.bf16.msra.mxu0 0
  %849 = vmatprep.subr.bf16.mxu0 0
  %850 = vmatpush1.bf16.msra.mxu0 0
  %851 = vmatprep.subr.bf16.mxu0 0
  %852 = vmatpush1.bf16.msra.mxu0 0
  %853 = vmatprep.subr.bf16.mxu0 0
  %854 = vmatpush1.bf16.msra.mxu0 0
  %855 = vmatprep.subr.bf16.mxu0 0
  %856 = vmatpush1.bf16.msra.mxu0 0
  %857 = vmatprep.subr.bf16.mxu0 0
  %858 = vmatpush1.bf16.msra.mxu0 0
  %859 = vmatprep.subr.bf16.mxu0 0
  %860 = vmatpush1.bf16.msra.mxu0 0
  %861 = vmatprep.mubr.bf16.mxu0 0
  %862 = vmatmul.mubr.bf16.gmra.mrb[0].mxu0 %v787
  %v863 = vpop.f32.mrb[0].mxu0
  %v864 = vadd.f32 0.0, %v863
  %v865 = vpop.f32.mrb[0].mxu0
  %v866 = vadd.f32 0.0, %v865
  %v867 = vpop.f32.mrb[0].mxu0
  %v868 = vpop.f32.mrb[0].mxu0
  %869 = vdwg.mxu0
  %v870 = vadd.f32 %v783, %v823
  %v871 = vadd.f32 %v784, %v825
  %v872 = vadd.f32 %v785, %v864
  %v873 = vadd.f32 %v786, %v866
  %v874 = vxor.u32 %v870, 2147483648
  %v875 = vmul.f32 %v874, 1.442695
  %v876 = vpow.pop %v875
  %v877 = vadd.f32 %v876, 1.0
  %v878 = vrcp.pop %v877
  %v879 = vmul.f32 1.0, %v878
  %v880 = vxor.u32 %v871, 2147483648
  %v881 = vmul.f32 %v880, 1.442695
  %v882 = vpow.pop %v881
  %v883 = vadd.f32 %v882, 1.0
  %v884 = vrcp.pop %v883
  %v885 = vmul.f32 1.0, %v884
  %v886 = vtanh.pop %v872
  %v887 = vxor.u32 %v873, 2147483648
  %v888 = vmul.f32 %v887, 1.442695
  %v889 = vpow.pop %v888
  %v890 = vadd.f32 %v889, 1.0
  %v891 = vrcp.pop %v890
  %v892 = vmul.f32 1.0, %v891
  %v893 = vmul.f32 %v885, %v779
  %v894 = vmul.f32 %v879, %v886
  %v895 = vadd.f32 %v893, %v894
  %v896 = vtanh.pop %v895
  %v897 = vmul.f32 %v892, %v896
  %s898 = scalar_lea.vmem %s0, 192
  %v899 = vld [vmem:[%s898] sm:$0xff]
  %v900 = vld [vmem:[%s898 + $0x8] sm:$0xff]
  %v901 = vld [vmem:[%s898 + $0x10] sm:$0xff]
  %v902 = vld [vmem:[%s898 + $0x18] sm:$0xff]
  %v903 = vpack.c.bf16 %v897, %v897
  %904 = vmatprep.subr.bf16.mxu0 %v145
  %905 = vmatpush1.bf16.msra.mxu0 %v144
  %906 = vmatprep.subr.bf16.mxu0 %v149
  %907 = vmatpush1.bf16.msra.mxu0 %v148
  %908 = vmatprep.subr.bf16.mxu0 %v153
  %909 = vmatpush1.bf16.msra.mxu0 %v152
  %910 = vmatprep.subr.bf16.mxu0 %v157
  %911 = vmatpush1.bf16.msra.mxu0 %v156
  %912 = vmatprep.subr.bf16.mxu0 %v161
  %913 = vmatpush1.bf16.msra.mxu0 %v160
  %914 = vmatprep.subr.bf16.mxu0 %v165
  %915 = vmatpush1.bf16.msra.mxu0 %v164
  %916 = vmatprep.subr.bf16.mxu0 %v169
  %917 = vmatpush1.bf16.msra.mxu0 %v168
  %918 = vmatprep.subr.bf16.mxu0 %v173
  %919 = vmatpush1.bf16.msra.mxu0 %v172
  %920 = vmatprep.subr.bf16.mxu0 0
  %921 = vmatpush1.bf16.msra.mxu0 0
  %922 = vmatprep.subr.bf16.mxu0 0
  %923 = vmatpush1.bf16.msra.mxu0 0
  %924 = vmatprep.subr.bf16.mxu0 0
  %925 = vmatpush1.bf16.msra.mxu0 0
  %926 = vmatprep.subr.bf16.mxu0 0
  %927 = vmatpush1.bf16.msra.mxu0 0
  %928 = vmatprep.subr.bf16.mxu0 0
  %929 = vmatpush1.bf16.msra.mxu0 0
  %930 = vmatprep.subr.bf16.mxu0 0
  %931 = vmatpush1.bf16.msra.mxu0 0
  %932 = vmatprep.subr.bf16.mxu0 0
  %933 = vmatpush1.bf16.msra.mxu0 0
  %934 = vmatprep.subr.bf16.mxu0 0
  %935 = vmatpush1.bf16.msra.mxu0 0
  %936 = vmatprep.mubr.bf16.mxu0 0
  %937 = vmatmul.mubr.bf16.gmra.mrb[0].mxu0 %v903
  %v938 = vpop.f32.mrb[0].mxu0
  %v939 = vadd.f32 0.0, %v938
  %v940 = vpop.f32.mrb[0].mxu0
  %v941 = vadd.f32 0.0, %v940
  %v942 = vpop.f32.mrb[0].mxu0
  %v943 = vpop.f32.mrb[0].mxu0
  %944 = vdwg.mxu0
  %945 = vmatprep.subr.bf16.mxu0 %v147
  %946 = vmatpush1.bf16.msra.mxu0 %v146
  %947 = vmatprep.subr.bf16.mxu0 %v151
  %948 = vmatpush1.bf16.msra.mxu0 %v150
  %949 = vmatprep.subr.bf16.mxu0 %v155
  %950 = vmatpush1.bf16.msra.mxu0 %v154
  %951 = vmatprep.subr.bf16.mxu0 %v159
  %952 = vmatpush1.bf16.msra.mxu0 %v158
  %953 = vmatprep.subr.bf16.mxu0 %v163
  %954 = vmatpush1.bf16.msra.mxu0 %v162
  %955 = vmatprep.subr.bf16.mxu0 %v167
  %956 = vmatpush1.bf16.msra.mxu0 %v166
  %957 = vmatprep.subr.bf16.mxu0 %v171
  %958 = vmatpush1.bf16.msra.mxu0 %v170
  %959 = vmatprep.subr.bf16.mxu0 %v175
  %960 = vmatpush1.bf16.msra.mxu0 %v174
  %961 = vmatprep.subr.bf16.mxu0 0
  %962 = vmatpush1.bf16.msra.mxu0 0
  %963 = vmatprep.subr.bf16.mxu0 0
  %964 = vmatpush1.bf16.msra.mxu0 0
  %965 = vmatprep.subr.bf16.mxu0 0
  %966 = vmatpush1.bf16.msra.mxu0 0
  %967 = vmatprep.subr.bf16.mxu0 0
  %968 = vmatpush1.bf16.msra.mxu0 0
  %969 = vmatprep.subr.bf16.mxu0 0
  %970 = vmatpush1.bf16.msra.mxu0 0
  %971 = vmatprep.subr.bf16.mxu0 0
  %972 = vmatpush1.bf16.msra.mxu0 0
  %973 = vmatprep.subr.bf16.mxu0 0
  %974 = vmatpush1.bf16.msra.mxu0 0
  %975 = vmatprep.subr.bf16.mxu0 0
  %976 = vmatpush1.bf16.msra.mxu0 0
  %977 = vmatprep.mubr.bf16.mxu0 0
  %978 = vmatmul.mubr.bf16.gmra.mrb[0].mxu0 %v903
  %v979 = vpop.f32.mrb[0].mxu0
  %v980 = vadd.f32 0.0, %v979
  %v981 = vpop.f32.mrb[0].mxu0
  %v982 = vadd.f32 0.0, %v981
  %v983 = vpop.f32.mrb[0].mxu0
  %v984 = vpop.f32.mrb[0].mxu0
  %985 = vdwg.mxu0
  %v986 = vadd.f32 %v899, %v939
  %v987 = vadd.f32 %v900, %v941
  %v988 = vadd.f32 %v901, %v980
  %v989 = vadd.f32 %v902, %v982
  %v990 = vxor.u32 %v986, 2147483648
  %v991 = vmul.f32 %v990, 1.442695
  %v992 = vpow.pop %v991
  %v993 = vadd.f32 %v992, 1.0
  %v994 = vrcp.pop %v993
  %v995 = vmul.f32 1.0, %v994
  %v996 = vxor.u32 %v987, 2147483648
  %v997 = vmul.f32 %v996, 1.442695
  %v998 = vpow.pop %v997
  %v999 = vadd.f32 %v998, 1.0
  %v1000 = vrcp.pop %v999
  %v1001 = vmul.f32 1.0, %v1000
  %v1002 = vtanh.pop %v988
  %v1003 = vxor.u32 %v989, 2147483648
  %v1004 = vmul.f32 %v1003, 1.442695
  %v1005 = vpow.pop %v1004
  %v1006 = vadd.f32 %v1005, 1.0
  %v1007 = vrcp.pop %v1006
  %v1008 = vmul.f32 1.0, %v1007
  %v1009 = vmul.f32 %v1001, %v895
  %v1010 = vmul.f32 %v995, %v1002
  %v1011 = vadd.f32 %v1009, %v1010
  %v1012 = vtanh.pop %v1011
  %v1013 = vmul.f32 %v1008, %v1012
  %s1014 = scalar_lea.vmem %s0, 224
  %v1015 = vld [vmem:[%s1014] sm:$0xff]
  %v1016 = vld [vmem:[%s1014 + $0x8] sm:$0xff]
  %v1017 = vld [vmem:[%s1014 + $0x10] sm:$0xff]
  %v1018 = vld [vmem:[%s1014 + $0x18] sm:$0xff]
  %v1019 = vpack.c.bf16 %v1013, %v1013
  %1020 = vmatprep.subr.bf16.mxu0 %v145
  %1021 = vmatpush1.bf16.msra.mxu0 %v144
  %1022 = vmatprep.subr.bf16.mxu0 %v149
  %1023 = vmatpush1.bf16.msra.mxu0 %v148
  %1024 = vmatprep.subr.bf16.mxu0 %v153
  %1025 = vmatpush1.bf16.msra.mxu0 %v152
  %1026 = vmatprep.subr.bf16.mxu0 %v157
  %1027 = vmatpush1.bf16.msra.mxu0 %v156
  %1028 = vmatprep.subr.bf16.mxu0 %v161
  %1029 = vmatpush1.bf16.msra.mxu0 %v160
  %1030 = vmatprep.subr.bf16.mxu0 %v165
  %1031 = vmatpush1.bf16.msra.mxu0 %v164
  %1032 = vmatprep.subr.bf16.mxu0 %v169
  %1033 = vmatpush1.bf16.msra.mxu0 %v168
  %1034 = vmatprep.subr.bf16.mxu0 %v173
  %1035 = vmatpush1.bf16.msra.mxu0 %v172
  %1036 = vmatprep.subr.bf16.mxu0 0
  %1037 = vmatpush1.bf16.msra.mxu0 0
  %1038 = vmatprep.subr.bf16.mxu0 0
  %1039 = vmatpush1.bf16.msra.mxu0 0
  %1040 = vmatprep.subr.bf16.mxu0 0
  %1041 = vmatpush1.bf16.msra.mxu0 0
  %1042 = vmatprep.subr.bf16.mxu0 0
  %1043 = vmatpush1.bf16.msra.mxu0 0
  %1044 = vmatprep.subr.bf16.mxu0 0
  %1045 = vmatpush1.bf16.msra.mxu0 0
  %1046 = vmatprep.subr.bf16.mxu0 0
  %1047 = vmatpush1.bf16.msra.mxu0 0
  %1048 = vmatprep.subr.bf16.mxu0 0
  %1049 = vmatpush1.bf16.msra.mxu0 0
  %1050 = vmatprep.subr.bf16.mxu0 0
  %1051 = vmatpush1.bf16.msra.mxu0 0
  %1052 = vmatprep.mubr.bf16.mxu0 0
  %1053 = vmatmul.mubr.bf16.gmra.mrb[0].mxu0 %v1019
  %v1054 = vpop.f32.mrb[0].mxu0
  %v1055 = vadd.f32 0.0, %v1054
  %v1056 = vpop.f32.mrb[0].mxu0
  %v1057 = vadd.f32 0.0, %v1056
  %v1058 = vpop.f32.mrb[0].mxu0
  %v1059 = vpop.f32.mrb[0].mxu0
  %1060 = vdwg.mxu0
  %1061 = vmatprep.subr.bf16.mxu0 %v147
  %1062 = vmatpush1.bf16.msra.mxu0 %v146
  %1063 = vmatprep.subr.bf16.mxu0 %v151
  %1064 = vmatpush1.bf16.msra.mxu0 %v150
  %1065 = vmatprep.subr.bf16.mxu0 %v155
  %1066 = vmatpush1.bf16.msra.mxu0 %v154
  %1067 = vmatprep.subr.bf16.mxu0 %v159
  %1068 = vmatpush1.bf16.msra.mxu0 %v158
  %1069 = vmatprep.subr.bf16.mxu0 %v163
  %1070 = vmatpush1.bf16.msra.mxu0 %v162
  %1071 = vmatprep.subr.bf16.mxu0 %v167
  %1072 = vmatpush1.bf16.msra.mxu0 %v166
  %1073 = vmatprep.subr.bf16.mxu0 %v171
  %1074 = vmatpush1.bf16.msra.mxu0 %v170
  %1075 = vmatprep.subr.bf16.mxu0 %v175
  %1076 = vmatpush1.bf16.msra.mxu0 %v174
  %1077 = vmatprep.subr.bf16.mxu0 0
  %1078 = vmatpush1.bf16.msra.mxu0 0
  %1079 = vmatprep.subr.bf16.mxu0 0
  %1080 = vmatpush1.bf16.msra.mxu0 0
  %1081 = vmatprep.subr.bf16.mxu0 0
  %1082 = vmatpush1.bf16.msra.mxu0 0
  %1083 = vmatprep.subr.bf16.mxu0 0
  %1084 = vmatpush1.bf16.msra.mxu0 0
  %1085 = vmatprep.subr.bf16.mxu0 0
  %1086 = vmatpush1.bf16.msra.mxu0 0
  %1087 = vmatprep.subr.bf16.mxu0 0
  %1088 = vmatpush1.bf16.msra.mxu0 0
  %1089 = vmatprep.subr.bf16.mxu0 0
  %1090 = vmatpush1.bf16.msra.mxu0 0
  %1091 = vmatprep.subr.bf16.mxu0 0
  %1092 = vmatpush1.bf16.msra.mxu0 0
  %1093 = vmatprep.mubr.bf16.mxu0 0
  %1094 = vmatmul.mubr.bf16.gmra.mrb[0].mxu0 %v1019
  %v1095 = vpop.f32.mrb[0].mxu0
  %v1096 = vadd.f32 0.0, %v1095
  %v1097 = vpop.f32.mrb[0].mxu0
  %v1098 = vadd.f32 0.0, %v1097
  %v1099 = vpop.f32.mrb[0].mxu0
  %v1100 = vpop.f32.mrb[0].mxu0
  %1101 = vdwg.mxu0
  %v1102 = vadd.f32 %v1015, %v1055
  %v1103 = vadd.f32 %v1016, %v1057
  %v1104 = vadd.f32 %v1017, %v1096
  %v1105 = vadd.f32 %v1018, %v1098
  %v1106 = vxor.u32 %v1102, 2147483648
  %v1107 = vmul.f32 %v1106, 1.442695
  %v1108 = vpow.pop %v1107
  %v1109 = vadd.f32 %v1108, 1.0
  %v1110 = vrcp.pop %v1109
  %v1111 = vmul.f32 1.0, %v1110
  %v1112 = vxor.u32 %v1103, 2147483648
  %v1113 = vmul.f32 %v1112, 1.442695
  %v1114 = vpow.pop %v1113
  %v1115 = vadd.f32 %v1114, 1.0
  %v1116 = vrcp.pop %v1115
  %v1117 = vmul.f32 1.0, %v1116
  %v1118 = vtanh.pop %v1104
  %v1119 = vxor.u32 %v1105, 2147483648
  %v1120 = vmul.f32 %v1119, 1.442695
  %v1121 = vpow.pop %v1120
  %v1122 = vadd.f32 %v1121, 1.0
  %v1123 = vrcp.pop %v1122
  %v1124 = vmul.f32 1.0, %v1123
  %v1125 = vmul.f32 %v1117, %v1011
  %v1126 = vmul.f32 %v1111, %v1118
  %v1127 = vadd.f32 %v1125, %v1126
  %v1128 = vtanh.pop %v1127
  %v1129 = vmul.f32 %v1124, %v1128
  %1130 = vst [vmem:[%s2] sm:$0xff] %v1129
  // Predicated region
  $region10: #{siam_lstm_forward.1} parent=0 // pred_check
    _
  $region11: #{siam_lstm_forward.1} parent=0 // pred_check_branch
    %1132 = sbr.rel (0) target = $region13
  $region12: #{siam_lstm_forward.1} parent=0 // pred_region
    _
  $region13: #{siam_lstm_forward.1} parent=0 // pred_fallthru
    _
  // Predicated region
  $region14: #{siam_lstm_forward.1} parent=0 // pred_check
    _
  $region15: #{siam_lstm_forward.1} parent=0 // pred_check_branch
    %1134 = sbr.rel (0) target = $region17
  $region16: #{siam_lstm_forward.1} parent=0 // pred_region
    _
  $region17: #{siam_lstm_forward.1} parent=0 // pred_fallthru
    _

</llo_original>
